<compile_context>
chip_gen: v5e
topology: v5e:2x2
jax: 0.10.0
libtpu: 0.0.40
codegen_flags: <defaults>
</compile_context>

<pallas_src>
import math

import jax
import jax.numpy as jnp
from jax import lax
from jax.experimental import pallas as pl
from jax.experimental.pallas import tpu as pltpu

# ----------------------------- model sizes ----------------------------------
D_MODEL = 32     # d_model
N_HEAD = 4       # n_head
D_FF = 64        # d_feedforward
L_Q = 8          # number of diagram queries
L_V = 16         # video sequence length
BATCH = 2
LN_EPS = 1e-5
LANES = 128

# ----------------------- packed-slab row offsets -----------------------------
# Weight slab (W_ROWS, 128): every matrix at lane offset 0, stacked along rows.
R_SA_IN = 0                            # (2D, 3D)  fused [diag‖pq] -> qkv
R_SA_OUT = R_SA_IN + 2 * D_MODEL       # (D,  D)   SA out-proj
R_CAQ_D = R_SA_OUT + D_MODEL           # (D,  D)   CA q weight for normed diag
R_CAQ_P = R_CAQ_D + D_MODEL            # (D,  D)   CA q weight for (pq + dpe)
R_CA_KV = R_CAQ_P + D_MODEL            # (2D, 2D)  fused [vid‖vpe] -> kv
R_CA_OUT = R_CA_KV + 2 * D_MODEL       # (D,  D)   CA out-proj
R_FFN1 = R_CA_OUT + D_MODEL            # (D,  F)
R_FFN2 = R_FFN1 + D_MODEL              # (F,  D)
W_ROWS = R_FFN2 + D_FF                 # 352

# Bias/LN slab (P_ROWS, 128): one vector per row at lane offset 0.
B_SA, B_SA_OUT, B_CAQ, B_CAKV, B_CA_OUT, B_FFN1, B_FFN2 = range(7)
B_LNG = 7       # rows 7..9   gamma of norm1/2/3
B_LNB = 10      # rows 10..12 beta  of norm1/2/3
P_ROWS = 16


# --------------------------- in-kernel helpers -------------------------------
def _mm(a, b):
    return jnp.dot(a, b, preferred_element_type=jnp.float32)


def _layer_norm(x, gamma, beta):
    mu = jnp.mean(x, axis=-1, keepdims=True)
    var = jnp.mean((x - mu) ** 2, axis=-1, keepdims=True)
    return (x - mu) * lax.rsqrt(var + LN_EPS) * gamma + beta


def _softmax(x):
    # Exact normalisation: returned attention weights must sum to 1.
    x = x - jnp.max(x, axis=-1, keepdims=True)
    e = jnp.exp(x)
    return e / jnp.sum(e, axis=-1, keepdims=True)


def _attention(q, k, v, out_w, out_b, batch, n_head):
    """MHA core on already in-projected q/k/v.

    q: (batch*Lq, D), k/v: (batch*Lk, D).  Heads are a static unrolled loop of
    lane slices; batch is the batch dim of 3-D einsums.  The out-projection is
    accumulated per head (K=dh matmuls, MXU has huge slack) instead of
    lane-concatenating the head outputs (keeps the XLU free for reductions).
    Returns (out (batch*Lq, D), head-averaged weights (batch, Lq, Lk)).
    """
    d = q.shape[-1]
    lq = q.shape[0] // batch
    lk = k.shape[0] // batch
    dh = d // n_head
    scale = 1.0 / math.sqrt(dh)

    q3 = q.reshape(batch, lq, d)      # leading-dim split only (cheap)
    k3 = k.reshape(batch, lk, d)
    v3 = v.reshape(batch, lk, d)

    out = None
    w_sum = None
    for h in range(n_head):           # static, unrolled (n_head = 4)
        sl = slice(h * dh, (h + 1) * dh)
        s = jnp.einsum('bqd,bkd->bqk', q3[:, :, sl], k3[:, :, sl],
                       preferred_element_type=jnp.float32) * scale
        p = _softmax(s)                                        # (batch, lq, lk)
        w_sum = p if w_sum is None else w_sum + p
        ctx = jnp.einsum('bqk,bkd->bqd', p, v3[:, :, sl],
                         preferred_element_type=jnp.float32)   # (batch, lq, dh)
        part = _mm(ctx.reshape(batch * lq, dh), out_w[sl, :])  # (batch*lq, d)
        out = part if out is None else out + part
    return out + out_b, w_sum * (1.0 / n_head)


# -------------------------------- kernel -------------------------------------
def content_decoder_layer_kernel(seq_ref, w_ref, p_ref, out_ref, ca_w_ref, sa_w_ref):
    B, Lq, D = out_ref.shape
    Lv = ca_w_ref.shape[2]
    assert D == D_MODEL
    blq, blv = B * Lq, B * Lv
    F = D_FF

    # Static views into the packed sequence slab (zero-cost slices).
    dq = seq_ref[0:blq, 0:2 * D]               # [diag ‖ pq]            (B*Lq, 2D)
    diag = seq_ref[0:blq, 0:D]                 # diagram_features       (B*Lq, D)
    pq2 = seq_ref[0:blq, 2 * D:3 * D]          # pq + dpe ('add' fuse)  (B*Lq, D)
    vv = seq_ref[blq:blq + blv, 0:2 * D]       # [vid ‖ vpe]            (B*Lv, 2D)

    # ---------------- self attention (sa_fuse='add', sa_v='diagram_feature') --
    # One matmul: per-operand projections pre-fused with the MHA in-projection.
    qkv = (_mm(dq, w_ref[R_SA_IN:R_SA_IN + 2 * D, 0:3 * D])
           + p_ref[B_SA:B_SA + 1, 0:3 * D])
    sa_out, sa_w = _attention(
        qkv[:, 0:D], qkv[:, D:2 * D], qkv[:, 2 * D:3 * D],
        w_ref[R_SA_OUT:R_SA_OUT + D, 0:D], p_ref[B_SA_OUT:B_SA_OUT + 1, 0:D],
        B, N_HEAD)
    diag_n = _layer_norm(diag + sa_out,                       # norm1 (dropout1=id)
                         p_ref[B_LNG:B_LNG + 1, 0:D], p_ref[B_LNB:B_LNB + 1, 0:D])

    # ---------------- cross attention (ca_fuse='add', ca_v='video_feature') ---
    q_ca = (_mm(diag_n, w_ref[R_CAQ_D:R_CAQ_D + D, 0:D])
            + _mm(pq2, w_ref[R_CAQ_P:R_CAQ_P + D, 0:D])
            + p_ref[B_CAQ:B_CAQ + 1, 0:D])
    kv = (_mm(vv, w_ref[R_CA_KV:R_CA_KV + 2 * D, 0:2 * D])
          + p_ref[B_CAKV:B_CAKV + 1, 0:2 * D])
    ca_out, ca_w = _attention(
        q_ca, kv[:, 0:D], kv[:, D:2 * D],
        w_ref[R_CA_OUT:R_CA_OUT + D, 0:D], p_ref[B_CA_OUT:B_CA_OUT + 1, 0:D],
        B, N_HEAD)
    x = _layer_norm(diag_n + ca_out,                          # norm2 (dropout2=id)
                    p_ref[B_LNG + 1:B_LNG + 2, 0:D], p_ref[B_LNB + 1:B_LNB + 2, 0:D])

    # ---------------- feed-forward (relu) --------------------------------------
    h = jnp.maximum(_mm(x, w_ref[R_FFN1:R_FFN1 + D, 0:F])
                    + p_ref[B_FFN1:B_FFN1 + 1, 0:F], 0.0)
    ff = _mm(h, w_ref[R_FFN2:R_FFN2 + F, 0:D]) + p_ref[B_FFN2:B_FFN2 + 1, 0:D]
    x = _layer_norm(x + ff,                                   # norm3 (dropout3=id)
                    p_ref[B_LNG + 2:B_LNG + 3, 0:D], p_ref[B_LNB + 2:B_LNB + 3, 0:D])

    out_ref[...] = x.reshape(B, Lq, D)
    ca_w_ref[...] = ca_w
    sa_w_ref[...] = sa_w


# ------------------------------- wrapper --------------------------------------
def content_decoder_layer(video_features, diagram_features, positional_query,
                          video_positional_encoding, diagram_positional_encoding,
                          weight_slab, bias_slab):
    B, Lq, D = diagram_features.shape
    Lv = video_features.shape[1]
    blq, blv = B * Lq, B * Lv

    # Pack the five sequence inputs into a single lane-padded slab (layout
    # plumbing only; one DMA instead of five).  pq + dpe is pre-added here
    # (diagram_pe_fuse_type='add', both are pure inputs).
    dq = jnp.concatenate([diagram_features, positional_query], axis=-1).reshape(blq, 2 * D)
    pq2 = (positional_query + diagram_positional_encoding).reshape(blq, D)
    vv = jnp.concatenate([video_features, video_positional_encoding],
                         axis=-1).reshape(blv, 2 * D)
    top = jnp.pad(jnp.concatenate([dq, pq2], axis=-1), ((0, 0), (0, LANES - 3 * D)))
    bot = jnp.pad(vv, ((0, 0), (0, LANES - 2 * D)))
    seq_slab = jnp.concatenate([top, bot], axis=0)            # (blq+blv, 128)

    vmem = pl.BlockSpec(memory_space=pltpu.MemorySpace.VMEM)
    out_shape = [
        jax.ShapeDtypeStruct((B, Lq, D), jnp.float32),
        jax.ShapeDtypeStruct((B, Lq, Lv), jnp.float32),
        jax.ShapeDtypeStruct((B, Lq, Lq), jnp.float32),
    ]
    # Grid-less single-shot call: whole problem (<300 KB) lives in VMEM.
    # TODO(synk): for large batch on v7x, reintroduce a "parallel" batch grid
    # axis so both TensorCores get work; at B=2 this form wins.
    fn = pl.pallas_call(
        content_decoder_layer_kernel,
        out_shape=out_shape,
        in_specs=[vmem, vmem, vmem],
        out_specs=[vmem, vmem, vmem],
    )
    return fn(seq_slab, weight_slab, bias_slab)


# ------------------------- parameter construction -----------------------------
def init_raw_params(key, D=D_MODEL, F=D_FF):
    """Deterministic synthetic module parameters in x @ W + b layout."""
    ks = iter(jax.random.split(key, 40))
    w = lambda shape, s=0.05: jax.random.normal(next(ks), shape, jnp.float32) * s
    raw = dict(
        sa_qc_w=w((D, D)), sa_qc_b=w((D,), 0.02),
        sa_qp_w=w((D, D)), sa_qp_b=w((D,), 0.02),
        sa_kc_w=w((D, D)), sa_kc_b=w((D,), 0.02),
        sa_kp_w=w((D, D)), sa_kp_b=w((D,), 0.02),
        sa_v_w=w((D, D)), sa_v_b=w((D,), 0.02),
        sa_in_w=w((D, 3 * D)), sa_in_b=w((3 * D,), 0.02),
        sa_out_w=w((D, D)), sa_out_b=w((D,), 0.02),
        ca_qc_w=w((D, D)), ca_qc_b=w((D,), 0.02),
        ca_qp_w=w((D, D)), ca_qp_b=w((D,), 0.02),
        ca_kc_w=w((D, D)), ca_kc_b=w((D,), 0.02),
        ca_kp_w=w((D, D)), ca_kp_b=w((D,), 0.02),
        ca_v_w=w((D, D)), ca_v_b=w((D,), 0.02),
        ca_in_w=w((D, 3 * D)), ca_in_b=w((3 * D,), 0.02),
        ca_out_w=w((D, D)), ca_out_b=w((D,), 0.02),
        ffn_w1=w((D, F)), ffn_b1=w((F,), 0.02),
        ffn_w2=w((F, D)), ffn_b2=w((D,), 0.02),
        ln_g=jnp.ones((3, D), jnp.float32),
        ln_b=jnp.zeros((3, D), jnp.float32),
    )
    return raw


def pack_params(r, D=D_MODEL, F=D_FF):
    """Fuse consecutive projection stages (exact, associativity) and pack all
    weights/biases into two contiguous VMEM slabs.  Done once, offline."""
    with jax.default_matmul_precision("float32"):
        z = jnp.zeros((D, D), jnp.float32)
        # -- self attention: fold MHA in-projection into the per-operand projs.
        wiq, wik, wiv = r['sa_in_w'][:, :D], r['sa_in_w'][:, D:2 * D], r['sa_in_w'][:, 2 * D:]
        biq, bik, biv = r['sa_in_b'][:D], r['sa_in_b'][D:2 * D], r['sa_in_b'][2 * D:]
        sa_rows_diag = jnp.concatenate(
            [r['sa_qc_w'] @ wiq, r['sa_kc_w'] @ wik, r['sa_v_w'] @ wiv], axis=1)
        sa_rows_pq = jnp.concatenate(
            [r['sa_qp_w'] @ wiq, r['sa_kp_w'] @ wik, z], axis=1)
        w_sa = jnp.concatenate([sa_rows_diag, sa_rows_pq], axis=0)          # (2D,3D)
        b_sa = jnp.concatenate([(r['sa_qc_b'] + r['sa_qp_b']) @ wiq + biq,
                                (r['sa_kc_b'] + r['sa_kp_b']) @ wik + bik,
                                r['sa_v_b'] @ wiv + biv])                   # (3D,)
        # -- cross attention
        cq, ck, cv = r['ca_in_w'][:, :D], r['ca_in_w'][:, D:2 * D], r['ca_in_w'][:, 2 * D:]
        cbq, cbk, cbv = r['ca_in_b'][:D], r['ca_in_b'][D:2 * D], r['ca_in_b'][2 * D:]
        w_caq_d = r['ca_qc_w'] @ cq
        w_caq_p = r['ca_qp_w'] @ cq
        b_caq = (r['ca_qc_b'] + r['ca_qp_b']) @ cq + cbq
        w_cakv = jnp.concatenate([
            jnp.concatenate([r['ca_kc_w'] @ ck, r['ca_v_w'] @ cv], axis=1),
            jnp.concatenate([r['ca_kp_w'] @ ck, z], axis=1)], axis=0)       # (2D,2D)
        b_cakv = jnp.concatenate([(r['ca_kc_b'] + r['ca_kp_b']) @ ck + cbk,
                                  r['ca_v_b'] @ cv + cbv])                  # (2D,)

    pad_w = lambda m: jnp.pad(m, ((0, 0), (0, LANES - m.shape[1])))
    weight_slab = jnp.concatenate([
        pad_w(w_sa), pad_w(r['sa_out_w']), pad_w(w_caq_d), pad_w(w_caq_p),
        pad_w(w_cakv), pad_w(r['ca_out_w']), pad_w(r['ffn_w1']), pad_w(r['ffn_w2'])],
        axis=0)
    assert weight_slab.shape == (W_ROWS, LANES)

    row = lambda v: jnp.pad(v, (0, LANES - v.shape[0]))[None, :]
    bias_slab = jnp.concatenate([
        row(b_sa), row(r['sa_out_b']), row(b_caq), row(b_cakv), row(r['ca_out_b']),
        row(r['ffn_b1']), row(r['ffn_b2']),
        row(r['ln_g'][0]), row(r['ln_g'][1]), row(r['ln_g'][2]),
        row(r['ln_b'][0]), row(r['ln_b'][1]), row(r['ln_b'][2]),
        jnp.zeros((P_ROWS - 13, LANES), jnp.float32)], axis=0)
    assert bias_slab.shape == (P_ROWS, LANES)
    return weight_slab, bias_slab


# --------------------------- pure-JAX reference --------------------------------
def reference_forward(vid, diag, pq, vpe, dpe, r):
    """Unpacked, straight-line re-implementation of the PyTorch module (eval)."""
    def lin(x, w, b):
        return x @ w + b

    def mha(q, k, v, in_w, in_b, out_w, out_b):
        B, Lq, D = q.shape
        Lk = k.shape[1]
        dh = D // N_HEAD
        qp = q @ in_w[:, :D] + in_b[:D]
        kp = k @ in_w[:, D:2 * D] + in_b[D:2 * D]
        vp = v @ in_w[:, 2 * D:] + in_b[2 * D:]
        qh = qp.reshape(B, Lq, N_HEAD, dh).transpose(0, 2, 1, 3)
        kh = kp.reshape(B, Lk, N_HEAD, dh).transpose(0, 2, 1, 3)
        vh = vp.reshape(B, Lk, N_HEAD, dh).transpose(0, 2, 1, 3)
        s = jnp.einsum('bhqd,bhkd->bhqk', qh, kh) / math.sqrt(dh)
        p = jax.nn.softmax(s, axis=-1)
        o = jnp.einsum('bhqk,bhkd->bhqd', p, vh).transpose(0, 2, 1, 3).reshape(B, Lq, D)
        return o @ out_w + out_b, p.mean(axis=1)

    def ln(x, g, b):
        mu = x.mean(-1, keepdims=True)
        var = ((x - mu) ** 2).mean(-1, keepdims=True)
        return (x - mu) / jnp.sqrt(var + LN_EPS) * g + b

    q = lin(diag, r['sa_qc_w'], r['sa_qc_b']) + lin(pq, r['sa_qp_w'], r['sa_qp_b'])
    k = lin(diag, r['sa_kc_w'], r['sa_kc_b']) + lin(pq, r['sa_kp_w'], r['sa_kp_b'])
    v = lin(diag, r['sa_v_w'], r['sa_v_b'])
    sa_out, sa_w = mha(q, k, v, r['sa_in_w'], r['sa_in_b'], r['sa_out_w'], r['sa_out_b'])
    diag1 = ln(diag + sa_out, r['ln_g'][0], r['ln_b'][0])
    pq2 = pq + dpe
    q = lin(diag1, r['ca_qc_w'], r['ca_qc_b']) + lin(pq2, r['ca_qp_w'], r['ca_qp_b'])
    k = lin(vid, r['ca_kc_w'], r['ca_kc_b']) + lin(vpe, r['ca_kp_w'], r['ca_kp_b'])
    v = lin(vid, r['ca_v_w'], r['ca_v_b'])
    ca_out, ca_w = mha(q, k, v, r['ca_in_w'], r['ca_in_b'], r['ca_out_w'], r['ca_out_b'])
    x = ln(diag1 + ca_out, r['ln_g'][1], r['ln_b'][1])
    ff = jnp.maximum(x @ r['ffn_w1'] + r['ffn_b1'], 0.0) @ r['ffn_w2'] + r['ffn_b2']
    x = ln(x + ff, r['ln_g'][2], r['ln_b'][2])
    return x, ca_w, sa_w


# --------------------------------- main ----------------------------------------
if __name__ == "__main__":
    key = jax.random.PRNGKey(0)
    k_in, k_par = jax.random.split(key)
    k1, k2, k3, k4, k5 = jax.random.split(k_in, 5)

    # layout: (batch, seq, d_model)
    video_features = jax.random.normal(k1, (BATCH, L_V, D_MODEL), jnp.float32)
    diagram_features = jax.random.normal(k2, (BATCH, L_Q, D_MODEL), jnp.float32)
    positional_query = jax.random.normal(k3, (BATCH, L_Q, D_MODEL), jnp.float32)
    video_pe = jax.random.normal(k4, (BATCH, L_V, D_MODEL), jnp.float32)
    diagram_pe = jax.random.normal(k5, (BATCH, L_Q, D_MODEL), jnp.float32)

    raw = init_raw_params(k_par)
    weight_slab, bias_slab = pack_params(raw)

    layer = jax.jit(content_decoder_layer)
    out, ca_w, sa_w = layer(video_features, diagram_features, positional_query,
                            video_pe, diagram_pe, weight_slab, bias_slab)
    jax.block_until_ready((out, ca_w, sa_w))

    assert out.shape == (BATCH, L_Q, D_MODEL)
    assert ca_w.shape == (BATCH, L_Q, L_V)
    assert sa_w.shape == (BATCH, L_Q, L_Q)
    assert bool(jnp.all(jnp.isfinite(out)))
    assert bool(jnp.all(jnp.isfinite(ca_w)))
    assert bool(jnp.all(jnp.isfinite(sa_w)))

    # Correctness vs pure-JAX reference (packed-weight accumulation order gives
    # small floating-point differences -> modest tolerance).
    with jax.default_matmul_precision("float32"):
        out_r, ca_r, sa_r = reference_forward(
            video_features, diagram_features, positional_query,
            video_pe, diagram_pe, raw)
    assert bool(jnp.allclose(out, out_r, rtol=2e-2, atol=2e-2))
    assert bool(jnp.allclose(ca_w, ca_r, rtol=2e-2, atol=2e-2))
    assert bool(jnp.allclose(sa_w, sa_r, rtol=2e-2, atol=2e-2))
    # Exact softmax divide -> returned attention weights are normalised.
    assert bool(jnp.allclose(jnp.sum(ca_w, axis=-1), 1.0, atol=1e-4))
    assert bool(jnp.allclose(jnp.sum(sa_w, axis=-1), 1.0, atol=1e-4))

    print("KERNEL_OK")
</pallas_src>

<mosaic_0001>
module attributes {stable_mosaic.version = 11 : i64} {
  func.func @content_decoder_layer_kernel(%arg0: memref<48x128xf32, #tpu.memory_space<vmem>>, %arg1: memref<352x128xf32, #tpu.memory_space<vmem>>, %arg2: memref<16x128xf32, #tpu.memory_space<vmem>>, %arg3: memref<2x8x32xf32, #tpu.memory_space<vmem>>, %arg4: memref<2x8x16xf32, #tpu.memory_space<vmem>>, %arg5: memref<2x8x8xf32, #tpu.memory_space<vmem>>) attributes {dimension_semantics = [], scalar_prefetch = 0 : i64, scratch_operands = 0 : i64, tpu.core_type = #tpu.core_type<tc>} {
    %c0 = arith.constant 0 : index
    %c0_0 = arith.constant 0 : index
    %0 = vector.load %arg0[%c0, %c0_0] : memref<48x128xf32, #tpu.memory_space<vmem>>, vector<16x64xf32>
    %c0_1 = arith.constant 0 : index
    %c0_2 = arith.constant 0 : index
    %1 = vector.load %arg0[%c0_1, %c0_2] : memref<48x128xf32, #tpu.memory_space<vmem>>, vector<16x32xf32>
    %c0_3 = arith.constant 0 : index
    %c64 = arith.constant 64 : index
    %2 = vector.load %arg0[%c0_3, %c64] : memref<48x128xf32, #tpu.memory_space<vmem>>, vector<16x32xf32>
    %c16 = arith.constant 16 : index
    %c0_4 = arith.constant 0 : index
    %3 = vector.load %arg0[%c16, %c0_4] : memref<48x128xf32, #tpu.memory_space<vmem>>, vector<32x64xf32>
    %c0_5 = arith.constant 0 : index
    %c0_6 = arith.constant 0 : index
    %4 = vector.load %arg1[%c0_5, %c0_6] : memref<352x128xf32, #tpu.memory_space<vmem>>, vector<64x96xf32>
    %cst = arith.constant dense<0.000000e+00> : vector<16x96xf32>
    %5 = tpu.matmul %0, %4, %cst {dimension_numbers = #tpu.dot_dimension_numbers<[1], [0], [0], [1], [0, 0, 1, 1], [], []>} : vector<16x64xf32>, vector<64x96xf32>, vector<16x96xf32> -> vector<16x96xf32>
    %c0_7 = arith.constant 0 : index
    %c0_8 = arith.constant 0 : index
    %6 = vector.load %arg2[%c0_7, %c0_8] : memref<16x128xf32, #tpu.memory_space<vmem>>, vector<1x96xf32>
    %7 = vector.broadcast %6 : vector<1x96xf32> to vector<16x96xf32>
    %8 = arith.addf %5, %7 : vector<16x96xf32>
    %9 = vector.extract_strided_slice %8 {offsets = [0, 0], sizes = [16, 32], strides = [1, 1]} : vector<16x96xf32> to vector<16x32xf32>
    %10 = vector.extract_strided_slice %8 {offsets = [0, 32], sizes = [16, 32], strides = [1, 1]} : vector<16x96xf32> to vector<16x32xf32>
    %11 = vector.extract_strided_slice %8 {offsets = [0, 64], sizes = [16, 32], strides = [1, 1]} : vector<16x96xf32> to vector<16x32xf32>
    %c64_9 = arith.constant 64 : index
    %c0_10 = arith.constant 0 : index
    %12 = vector.load %arg1[%c64_9, %c0_10] : memref<352x128xf32, #tpu.memory_space<vmem>>, vector<32x32xf32>
    %c1 = arith.constant 1 : index
    %c0_11 = arith.constant 0 : index
    %13 = vector.load %arg2[%c1, %c0_11] : memref<16x128xf32, #tpu.memory_space<vmem>>, vector<1x32xf32>
    %14 = vector.shape_cast %9 : vector<16x32xf32> to vector<2x8x32xf32>
    %15 = vector.shape_cast %10 : vector<16x32xf32> to vector<2x8x32xf32>
    %16 = vector.shape_cast %11 : vector<16x32xf32> to vector<2x8x32xf32>
    %17 = vector.extract_strided_slice %14 {offsets = [0, 0, 0], sizes = [2, 8, 8], strides = [1, 1, 1]} : vector<2x8x32xf32> to vector<2x8x8xf32>
    %18 = vector.extract_strided_slice %15 {offsets = [0, 0, 0], sizes = [2, 8, 8], strides = [1, 1, 1]} : vector<2x8x32xf32> to vector<2x8x8xf32>
    "tpu.trace_start"() <{level = 10 : i32, message = "bqd,bkd->bqk"}> : () -> ()
    %cst_12 = arith.constant dense<0.000000e+00> : vector<2x8x8xf32>
    %19 = tpu.matmul %17, %18, %cst_12 {dimension_numbers = #tpu.dot_dimension_numbers<[2], [2], [1], [1], [0, 0, 0, 1, 1, 1], [0], [0]>} : vector<2x8x8xf32>, vector<2x8x8xf32>, vector<2x8x8xf32> -> vector<2x8x8xf32>
    "tpu.trace_stop"() : () -> ()
    %cst_13 = arith.constant 0.353553385 : f32
    %20 = vector.broadcast %cst_13 : f32 to vector<2x8x8xf32>
    %21 = arith.mulf %19, %20 : vector<2x8x8xf32>
    %cst_14 = arith.constant dense<0xFF800000> : vector<2x8xf32>
    %22 = vector.multi_reduction <maximumf>, %21, %cst_14 [2] : vector<2x8x8xf32> to vector<2x8xf32>
    %23 = vector.shape_cast %22 : vector<2x8xf32> to vector<2x8x1xf32>
    %24 = vector.broadcast %23 : vector<2x8x1xf32> to vector<2x8x8xf32>
    %25 = arith.subf %21, %24 : vector<2x8x8xf32>
    %26 = math.exp %25 : vector<2x8x8xf32>
    %cst_15 = arith.constant dense<0.000000e+00> : vector<2x8xf32>
    %27 = vector.multi_reduction <add>, %26, %cst_15 [2] : vector<2x8x8xf32> to vector<2x8xf32>
    %28 = vector.shape_cast %27 : vector<2x8xf32> to vector<2x8x1xf32>
    %29 = vector.broadcast %28 : vector<2x8x1xf32> to vector<2x8x8xf32>
    %30 = arith.divf %26, %29 : vector<2x8x8xf32>
    %31 = vector.extract_strided_slice %16 {offsets = [0, 0, 0], sizes = [2, 8, 8], strides = [1, 1, 1]} : vector<2x8x32xf32> to vector<2x8x8xf32>
    "tpu.trace_start"() <{level = 10 : i32, message = "bqk,bkd->bqd"}> : () -> ()
    %cst_16 = arith.constant dense<0.000000e+00> : vector<2x8x8xf32>
    %32 = tpu.matmul %30, %31, %cst_16 {dimension_numbers = #tpu.dot_dimension_numbers<[2], [1], [1], [2], [0, 0, 0, 1, 1, 2], [0], [0]>} : vector<2x8x8xf32>, vector<2x8x8xf32>, vector<2x8x8xf32> -> vector<2x8x8xf32>
    "tpu.trace_stop"() : () -> ()
    %33 = vector.shape_cast %32 : vector<2x8x8xf32> to vector<16x8xf32>
    %34 = vector.extract_strided_slice %12 {offsets = [0, 0], sizes = [8, 32], strides = [1, 1]} : vector<32x32xf32> to vector<8x32xf32>
    %cst_17 = arith.constant dense<0.000000e+00> : vector<16x32xf32>
    %35 = tpu.matmul %33, %34, %cst_17 {dimension_numbers = #tpu.dot_dimension_numbers<[1], [0], [0], [1], [0, 0, 1, 1], [], []>} : vector<16x8xf32>, vector<8x32xf32>, vector<16x32xf32> -> vector<16x32xf32>
    %36 = vector.extract_strided_slice %14 {offsets = [0, 0, 8], sizes = [2, 8, 8], strides = [1, 1, 1]} : vector<2x8x32xf32> to vector<2x8x8xf32>
    %37 = vector.extract_strided_slice %15 {offsets = [0, 0, 8], sizes = [2, 8, 8], strides = [1, 1, 1]} : vector<2x8x32xf32> to vector<2x8x8xf32>
    "tpu.trace_start"() <{level = 10 : i32, message = "bqd,bkd->bqk"}> : () -> ()
    %cst_18 = arith.constant dense<0.000000e+00> : vector<2x8x8xf32>
    %38 = tpu.matmul %36, %37, %cst_18 {dimension_numbers = #tpu.dot_dimension_numbers<[2], [2], [1], [1], [0, 0, 0, 1, 1, 1], [0], [0]>} : vector<2x8x8xf32>, vector<2x8x8xf32>, vector<2x8x8xf32> -> vector<2x8x8xf32>
    "tpu.trace_stop"() : () -> ()
    %cst_19 = arith.constant 0.353553385 : f32
    %39 = vector.broadcast %cst_19 : f32 to vector<2x8x8xf32>
    %40 = arith.mulf %38, %39 : vector<2x8x8xf32>
    %cst_20 = arith.constant dense<0xFF800000> : vector<2x8xf32>
    %41 = vector.multi_reduction <maximumf>, %40, %cst_20 [2] : vector<2x8x8xf32> to vector<2x8xf32>
    %42 = vector.shape_cast %41 : vector<2x8xf32> to vector<2x8x1xf32>
    %43 = vector.broadcast %42 : vector<2x8x1xf32> to vector<2x8x8xf32>
    %44 = arith.subf %40, %43 : vector<2x8x8xf32>
    %45 = math.exp %44 : vector<2x8x8xf32>
    %cst_21 = arith.constant dense<0.000000e+00> : vector<2x8xf32>
    %46 = vector.multi_reduction <add>, %45, %cst_21 [2] : vector<2x8x8xf32> to vector<2x8xf32>
    %47 = vector.shape_cast %46 : vector<2x8xf32> to vector<2x8x1xf32>
    %48 = vector.broadcast %47 : vector<2x8x1xf32> to vector<2x8x8xf32>
    %49 = arith.divf %45, %48 : vector<2x8x8xf32>
    %50 = arith.addf %30, %49 : vector<2x8x8xf32>
    %51 = vector.extract_strided_slice %16 {offsets = [0, 0, 8], sizes = [2, 8, 8], strides = [1, 1, 1]} : vector<2x8x32xf32> to vector<2x8x8xf32>
    "tpu.trace_start"() <{level = 10 : i32, message = "bqk,bkd->bqd"}> : () -> ()
    %cst_22 = arith.constant dense<0.000000e+00> : vector<2x8x8xf32>
    %52 = tpu.matmul %49, %51, %cst_22 {dimension_numbers = #tpu.dot_dimension_numbers<[2], [1], [1], [2], [0, 0, 0, 1, 1, 2], [0], [0]>} : vector<2x8x8xf32>, vector<2x8x8xf32>, vector<2x8x8xf32> -> vector<2x8x8xf32>
    "tpu.trace_stop"() : () -> ()
    %53 = vector.shape_cast %52 : vector<2x8x8xf32> to vector<16x8xf32>
    %54 = vector.extract_strided_slice %12 {offsets = [8, 0], sizes = [8, 32], strides = [1, 1]} : vector<32x32xf32> to vector<8x32xf32>
    %cst_23 = arith.constant dense<0.000000e+00> : vector<16x32xf32>
    %55 = tpu.matmul %53, %54, %cst_23 {dimension_numbers = #tpu.dot_dimension_numbers<[1], [0], [0], [1], [0, 0, 1, 1], [], []>} : vector<16x8xf32>, vector<8x32xf32>, vector<16x32xf32> -> vector<16x32xf32>
    %56 = arith.addf %35, %55 : vector<16x32xf32>
    %57 = vector.extract_strided_slice %14 {offsets = [0, 0, 16], sizes = [2, 8, 8], strides = [1, 1, 1]} : vector<2x8x32xf32> to vector<2x8x8xf32>
    %58 = vector.extract_strided_slice %15 {offsets = [0, 0, 16], sizes = [2, 8, 8], strides = [1, 1, 1]} : vector<2x8x32xf32> to vector<2x8x8xf32>
    "tpu.trace_start"() <{level = 10 : i32, message = "bqd,bkd->bqk"}> : () -> ()
    %cst_24 = arith.constant dense<0.000000e+00> : vector<2x8x8xf32>
    %59 = tpu.matmul %57, %58, %cst_24 {dimension_numbers = #tpu.dot_dimension_numbers<[2], [2], [1], [1], [0, 0, 0, 1, 1, 1], [0], [0]>} : vector<2x8x8xf32>, vector<2x8x8xf32>, vector<2x8x8xf32> -> vector<2x8x8xf32>
    "tpu.trace_stop"() : () -> ()
    %cst_25 = arith.constant 0.353553385 : f32
    %60 = vector.broadcast %cst_25 : f32 to vector<2x8x8xf32>
    %61 = arith.mulf %59, %60 : vector<2x8x8xf32>
    %cst_26 = arith.constant dense<0xFF800000> : vector<2x8xf32>
    %62 = vector.multi_reduction <maximumf>, %61, %cst_26 [2] : vector<2x8x8xf32> to vector<2x8xf32>
    %63 = vector.shape_cast %62 : vector<2x8xf32> to vector<2x8x1xf32>
    %64 = vector.broadcast %63 : vector<2x8x1xf32> to vector<2x8x8xf32>
    %65 = arith.subf %61, %64 : vector<2x8x8xf32>
    %66 = math.exp %65 : vector<2x8x8xf32>
    %cst_27 = arith.constant dense<0.000000e+00> : vector<2x8xf32>
    %67 = vector.multi_reduction <add>, %66, %cst_27 [2] : vector<2x8x8xf32> to vector<2x8xf32>
    %68 = vector.shape_cast %67 : vector<2x8xf32> to vector<2x8x1xf32>
    %69 = vector.broadcast %68 : vector<2x8x1xf32> to vector<2x8x8xf32>
    %70 = arith.divf %66, %69 : vector<2x8x8xf32>
    %71 = arith.addf %50, %70 : vector<2x8x8xf32>
    %72 = vector.extract_strided_slice %16 {offsets = [0, 0, 16], sizes = [2, 8, 8], strides = [1, 1, 1]} : vector<2x8x32xf32> to vector<2x8x8xf32>
    "tpu.trace_start"() <{level = 10 : i32, message = "bqk,bkd->bqd"}> : () -> ()
    %cst_28 = arith.constant dense<0.000000e+00> : vector<2x8x8xf32>
    %73 = tpu.matmul %70, %72, %cst_28 {dimension_numbers = #tpu.dot_dimension_numbers<[2], [1], [1], [2], [0, 0, 0, 1, 1, 2], [0], [0]>} : vector<2x8x8xf32>, vector<2x8x8xf32>, vector<2x8x8xf32> -> vector<2x8x8xf32>
    "tpu.trace_stop"() : () -> ()
    %74 = vector.shape_cast %73 : vector<2x8x8xf32> to vector<16x8xf32>
    %75 = vector.extract_strided_slice %12 {offsets = [16, 0], sizes = [8, 32], strides = [1, 1]} : vector<32x32xf32> to vector<8x32xf32>
    %cst_29 = arith.constant dense<0.000000e+00> : vector<16x32xf32>
    %76 = tpu.matmul %74, %75, %cst_29 {dimension_numbers = #tpu.dot_dimension_numbers<[1], [0], [0], [1], [0, 0, 1, 1], [], []>} : vector<16x8xf32>, vector<8x32xf32>, vector<16x32xf32> -> vector<16x32xf32>
    %77 = arith.addf %56, %76 : vector<16x32xf32>
    %78 = vector.extract_strided_slice %14 {offsets = [0, 0, 24], sizes = [2, 8, 8], strides = [1, 1, 1]} : vector<2x8x32xf32> to vector<2x8x8xf32>
    %79 = vector.extract_strided_slice %15 {offsets = [0, 0, 24], sizes = [2, 8, 8], strides = [1, 1, 1]} : vector<2x8x32xf32> to vector<2x8x8xf32>
    "tpu.trace_start"() <{level = 10 : i32, message = "bqd,bkd->bqk"}> : () -> ()
    %cst_30 = arith.constant dense<0.000000e+00> : vector<2x8x8xf32>
    %80 = tpu.matmul %78, %79, %cst_30 {dimension_numbers = #tpu.dot_dimension_numbers<[2], [2], [1], [1], [0, 0, 0, 1, 1, 1], [0], [0]>} : vector<2x8x8xf32>, vector<2x8x8xf32>, vector<2x8x8xf32> -> vector<2x8x8xf32>
    "tpu.trace_stop"() : () -> ()
    %cst_31 = arith.constant 0.353553385 : f32
    %81 = vector.broadcast %cst_31 : f32 to vector<2x8x8xf32>
    %82 = arith.mulf %80, %81 : vector<2x8x8xf32>
    %cst_32 = arith.constant dense<0xFF800000> : vector<2x8xf32>
    %83 = vector.multi_reduction <maximumf>, %82, %cst_32 [2] : vector<2x8x8xf32> to vector<2x8xf32>
    %84 = vector.shape_cast %83 : vector<2x8xf32> to vector<2x8x1xf32>
    %85 = vector.broadcast %84 : vector<2x8x1xf32> to vector<2x8x8xf32>
    %86 = arith.subf %82, %85 : vector<2x8x8xf32>
    %87 = math.exp %86 : vector<2x8x8xf32>
    %cst_33 = arith.constant dense<0.000000e+00> : vector<2x8xf32>
    %88 = vector.multi_reduction <add>, %87, %cst_33 [2] : vector<2x8x8xf32> to vector<2x8xf32>
    %89 = vector.shape_cast %88 : vector<2x8xf32> to vector<2x8x1xf32>
    %90 = vector.broadcast %89 : vector<2x8x1xf32> to vector<2x8x8xf32>
    %91 = arith.divf %87, %90 : vector<2x8x8xf32>
    %92 = arith.addf %71, %91 : vector<2x8x8xf32>
    %93 = vector.extract_strided_slice %16 {offsets = [0, 0, 24], sizes = [2, 8, 8], strides = [1, 1, 1]} : vector<2x8x32xf32> to vector<2x8x8xf32>
    "tpu.trace_start"() <{level = 10 : i32, message = "bqk,bkd->bqd"}> : () -> ()
    %cst_34 = arith.constant dense<0.000000e+00> : vector<2x8x8xf32>
    %94 = tpu.matmul %91, %93, %cst_34 {dimension_numbers = #tpu.dot_dimension_numbers<[2], [1], [1], [2], [0, 0, 0, 1, 1, 2], [0], [0]>} : vector<2x8x8xf32>, vector<2x8x8xf32>, vector<2x8x8xf32> -> vector<2x8x8xf32>
    "tpu.trace_stop"() : () -> ()
    %95 = vector.shape_cast %94 : vector<2x8x8xf32> to vector<16x8xf32>
    %96 = vector.extract_strided_slice %12 {offsets = [24, 0], sizes = [8, 32], strides = [1, 1]} : vector<32x32xf32> to vector<8x32xf32>
    %cst_35 = arith.constant dense<0.000000e+00> : vector<16x32xf32>
    %97 = tpu.matmul %95, %96, %cst_35 {dimension_numbers = #tpu.dot_dimension_numbers<[1], [0], [0], [1], [0, 0, 1, 1], [], []>} : vector<16x8xf32>, vector<8x32xf32>, vector<16x32xf32> -> vector<16x32xf32>
    %98 = arith.addf %77, %97 : vector<16x32xf32>
    %99 = vector.broadcast %13 : vector<1x32xf32> to vector<16x32xf32>
    %100 = arith.addf %98, %99 : vector<16x32xf32>
    %cst_36 = arith.constant 2.500000e-01 : f32
    %101 = vector.broadcast %cst_36 : f32 to vector<2x8x8xf32>
    %102 = arith.mulf %92, %101 : vector<2x8x8xf32>
    %103 = arith.addf %1, %100 : vector<16x32xf32>
    %c7 = arith.constant 7 : index
    %c0_37 = arith.constant 0 : index
    %104 = vector.load %arg2[%c7, %c0_37] : memref<16x128xf32, #tpu.memory_space<vmem>>, vector<1x32xf32>
    %c10 = arith.constant 10 : index
    %c0_38 = arith.constant 0 : index
    %105 = vector.load %arg2[%c10, %c0_38] : memref<16x128xf32, #tpu.memory_space<vmem>>, vector<1x32xf32>
    %cst_39 = arith.constant dense<0.000000e+00> : vector<16xf32>
    %106 = vector.multi_reduction <add>, %103, %cst_39 [1] : vector<16x32xf32> to vector<16xf32>
    %107 = vector.shape_cast %106 : vector<16xf32> to vector<16x1xf32>
    %cst_40 = arith.constant 3.200000e+01 : f32
    %108 = vector.broadcast %cst_40 : f32 to vector<16x1xf32>
    %109 = arith.divf %107, %108 : vector<16x1xf32>
    %110 = vector.broadcast %109 : vector<16x1xf32> to vector<16x32xf32>
    %111 = arith.subf %103, %110 : vector<16x32xf32>
    %112 = arith.mulf %111, %111 : vector<16x32xf32>
    %cst_41 = arith.constant dense<0.000000e+00> : vector<16xf32>
    %113 = vector.multi_reduction <add>, %112, %cst_41 [1] : vector<16x32xf32> to vector<16xf32>
    %114 = vector.shape_cast %113 : vector<16xf32> to vector<16x1xf32>
    %cst_42 = arith.constant 3.200000e+01 : f32
    %115 = vector.broadcast %cst_42 : f32 to vector<16x1xf32>
    %116 = arith.divf %114, %115 : vector<16x1xf32>
    %117 = vector.broadcast %109 : vector<16x1xf32> to vector<16x32xf32>
    %118 = arith.subf %103, %117 : vector<16x32xf32>
    %cst_43 = arith.constant 9.99999974E-6 : f32
    %119 = vector.broadcast %cst_43 : f32 to vector<16x1xf32>
    %120 = arith.addf %116, %119 : vector<16x1xf32>
    %121 = math.rsqrt %120 : vector<16x1xf32>
    %122 = vector.broadcast %121 : vector<16x1xf32> to vector<16x32xf32>
    %123 = arith.mulf %118, %122 : vector<16x32xf32>
    %124 = vector.broadcast %104 : vector<1x32xf32> to vector<16x32xf32>
    %125 = arith.mulf %123, %124 : vector<16x32xf32>
    %126 = vector.broadcast %105 : vector<1x32xf32> to vector<16x32xf32>
    %127 = arith.addf %125, %126 : vector<16x32xf32>
    %c96 = arith.constant 96 : index
    %c0_44 = arith.constant 0 : index
    %128 = vector.load %arg1[%c96, %c0_44] : memref<352x128xf32, #tpu.memory_space<vmem>>, vector<32x32xf32>
    %cst_45 = arith.constant dense<0.000000e+00> : vector<16x32xf32>
    %129 = tpu.matmul %127, %128, %cst_45 {dimension_numbers = #tpu.dot_dimension_numbers<[1], [0], [0], [1], [0, 0, 1, 1], [], []>} : vector<16x32xf32>, vector<32x32xf32>, vector<16x32xf32> -> vector<16x32xf32>
    %c128 = arith.constant 128 : index
    %c0_46 = arith.constant 0 : index
    %130 = vector.load %arg1[%c128, %c0_46] : memref<352x128xf32, #tpu.memory_space<vmem>>, vector<32x32xf32>
    %cst_47 = arith.constant dense<0.000000e+00> : vector<16x32xf32>
    %131 = tpu.matmul %2, %130, %cst_47 {dimension_numbers = #tpu.dot_dimension_numbers<[1], [0], [0], [1], [0, 0, 1, 1], [], []>} : vector<16x32xf32>, vector<32x32xf32>, vector<16x32xf32> -> vector<16x32xf32>
    %132 = arith.addf %129, %131 : vector<16x32xf32>
    %c2 = arith.constant 2 : index
    %c0_48 = arith.constant 0 : index
    %133 = vector.load %arg2[%c2, %c0_48] : memref<16x128xf32, #tpu.memory_space<vmem>>, vector<1x32xf32>
    %134 = vector.broadcast %133 : vector<1x32xf32> to vector<16x32xf32>
    %135 = arith.addf %132, %134 : vector<16x32xf32>
    %c160 = arith.constant 160 : index
    %c0_49 = arith.constant 0 : index
    %136 = vector.load %arg1[%c160, %c0_49] : memref<352x128xf32, #tpu.memory_space<vmem>>, vector<64x64xf32>
    %cst_50 = arith.constant dense<0.000000e+00> : vector<32x64xf32>
    %137 = tpu.matmul %3, %136, %cst_50 {dimension_numbers = #tpu.dot_dimension_numbers<[1], [0], [0], [1], [0, 0, 1, 1], [], []>} : vector<32x64xf32>, vector<64x64xf32>, vector<32x64xf32> -> vector<32x64xf32>
    %c3 = arith.constant 3 : index
    %c0_51 = arith.constant 0 : index
    %138 = vector.load %arg2[%c3, %c0_51] : memref<16x128xf32, #tpu.memory_space<vmem>>, vector<1x64xf32>
    %139 = vector.broadcast %138 : vector<1x64xf32> to vector<32x64xf32>
    %140 = arith.addf %137, %139 : vector<32x64xf32>
    %141 = vector.extract_strided_slice %140 {offsets = [0, 0], sizes = [32, 32], strides = [1, 1]} : vector<32x64xf32> to vector<32x32xf32>
    %142 = vector.extract_strided_slice %140 {offsets = [0, 32], sizes = [32, 32], strides = [1, 1]} : vector<32x64xf32> to vector<32x32xf32>
    %c224 = arith.constant 224 : index
    %c0_52 = arith.constant 0 : index
    %143 = vector.load %arg1[%c224, %c0_52] : memref<352x128xf32, #tpu.memory_space<vmem>>, vector<32x32xf32>
    %c4 = arith.constant 4 : index
    %c0_53 = arith.constant 0 : index
    %144 = vector.load %arg2[%c4, %c0_53] : memref<16x128xf32, #tpu.memory_space<vmem>>, vector<1x32xf32>
    %145 = vector.shape_cast %135 : vector<16x32xf32> to vector<2x8x32xf32>
    %146 = vector.shape_cast %141 : vector<32x32xf32> to vector<2x16x32xf32>
    %147 = vector.shape_cast %142 : vector<32x32xf32> to vector<2x16x32xf32>
    %148 = vector.extract_strided_slice %145 {offsets = [0, 0, 0], sizes = [2, 8, 8], strides = [1, 1, 1]} : vector<2x8x32xf32> to vector<2x8x8xf32>
    %149 = vector.extract_strided_slice %146 {offsets = [0, 0, 0], sizes = [2, 16, 8], strides = [1, 1, 1]} : vector<2x16x32xf32> to vector<2x16x8xf32>
    "tpu.trace_start"() <{level = 10 : i32, message = "bqd,bkd->bqk"}> : () -> ()
    %cst_54 = arith.constant dense<0.000000e+00> : vector<2x8x16xf32>
    %150 = tpu.matmul %148, %149, %cst_54 {dimension_numbers = #tpu.dot_dimension_numbers<[2], [2], [1], [1], [0, 0, 0, 1, 1, 1], [0], [0]>} : vector<2x8x8xf32>, vector<2x16x8xf32>, vector<2x8x16xf32> -> vector<2x8x16xf32>
    "tpu.trace_stop"() : () -> ()
    %cst_55 = arith.constant 0.353553385 : f32
    %151 = vector.broadcast %cst_55 : f32 to vector<2x8x16xf32>
    %152 = arith.mulf %150, %151 : vector<2x8x16xf32>
    %cst_56 = arith.constant dense<0xFF800000> : vector<2x8xf32>
    %153 = vector.multi_reduction <maximumf>, %152, %cst_56 [2] : vector<2x8x16xf32> to vector<2x8xf32>
    %154 = vector.shape_cast %153 : vector<2x8xf32> to vector<2x8x1xf32>
    %155 = vector.broadcast %154 : vector<2x8x1xf32> to vector<2x8x16xf32>
    %156 = arith.subf %152, %155 : vector<2x8x16xf32>
    %157 = math.exp %156 : vector<2x8x16xf32>
    %cst_57 = arith.constant dense<0.000000e+00> : vector<2x8xf32>
    %158 = vector.multi_reduction <add>, %157, %cst_57 [2] : vector<2x8x16xf32> to vector<2x8xf32>
    %159 = vector.shape_cast %158 : vector<2x8xf32> to vector<2x8x1xf32>
    %160 = vector.broadcast %159 : vector<2x8x1xf32> to vector<2x8x16xf32>
    %161 = arith.divf %157, %160 : vector<2x8x16xf32>
    %162 = vector.extract_strided_slice %147 {offsets = [0, 0, 0], sizes = [2, 16, 8], strides = [1, 1, 1]} : vector<2x16x32xf32> to vector<2x16x8xf32>
    "tpu.trace_start"() <{level = 10 : i32, message = "bqk,bkd->bqd"}> : () -> ()
    %cst_58 = arith.constant dense<0.000000e+00> : vector<2x8x8xf32>
    %163 = tpu.matmul %161, %162, %cst_58 {dimension_numbers = #tpu.dot_dimension_numbers<[2], [1], [1], [2], [0, 0, 0, 1, 1, 2], [0], [0]>} : vector<2x8x16xf32>, vector<2x16x8xf32>, vector<2x8x8xf32> -> vector<2x8x8xf32>
    "tpu.trace_stop"() : () -> ()
    %164 = vector.shape_cast %163 : vector<2x8x8xf32> to vector<16x8xf32>
    %165 = vector.extract_strided_slice %143 {offsets = [0, 0], sizes = [8, 32], strides = [1, 1]} : vector<32x32xf32> to vector<8x32xf32>
    %cst_59 = arith.constant dense<0.000000e+00> : vector<16x32xf32>
    %166 = tpu.matmul %164, %165, %cst_59 {dimension_numbers = #tpu.dot_dimension_numbers<[1], [0], [0], [1], [0, 0, 1, 1], [], []>} : vector<16x8xf32>, vector<8x32xf32>, vector<16x32xf32> -> vector<16x32xf32>
    %167 = vector.extract_strided_slice %145 {offsets = [0, 0, 8], sizes = [2, 8, 8], strides = [1, 1, 1]} : vector<2x8x32xf32> to vector<2x8x8xf32>
    %168 = vector.extract_strided_slice %146 {offsets = [0, 0, 8], sizes = [2, 16, 8], strides = [1, 1, 1]} : vector<2x16x32xf32> to vector<2x16x8xf32>
    "tpu.trace_start"() <{level = 10 : i32, message = "bqd,bkd->bqk"}> : () -> ()
    %cst_60 = arith.constant dense<0.000000e+00> : vector<2x8x16xf32>
    %169 = tpu.matmul %167, %168, %cst_60 {dimension_numbers = #tpu.dot_dimension_numbers<[2], [2], [1], [1], [0, 0, 0, 1, 1, 1], [0], [0]>} : vector<2x8x8xf32>, vector<2x16x8xf32>, vector<2x8x16xf32> -> vector<2x8x16xf32>
    "tpu.trace_stop"() : () -> ()
    %cst_61 = arith.constant 0.353553385 : f32
    %170 = vector.broadcast %cst_61 : f32 to vector<2x8x16xf32>
    %171 = arith.mulf %169, %170 : vector<2x8x16xf32>
    %cst_62 = arith.constant dense<0xFF800000> : vector<2x8xf32>
    %172 = vector.multi_reduction <maximumf>, %171, %cst_62 [2] : vector<2x8x16xf32> to vector<2x8xf32>
    %173 = vector.shape_cast %172 : vector<2x8xf32> to vector<2x8x1xf32>
    %174 = vector.broadcast %173 : vector<2x8x1xf32> to vector<2x8x16xf32>
    %175 = arith.subf %171, %174 : vector<2x8x16xf32>
    %176 = math.exp %175 : vector<2x8x16xf32>
    %cst_63 = arith.constant dense<0.000000e+00> : vector<2x8xf32>
    %177 = vector.multi_reduction <add>, %176, %cst_63 [2] : vector<2x8x16xf32> to vector<2x8xf32>
    %178 = vector.shape_cast %177 : vector<2x8xf32> to vector<2x8x1xf32>
    %179 = vector.broadcast %178 : vector<2x8x1xf32> to vector<2x8x16xf32>
    %180 = arith.divf %176, %179 : vector<2x8x16xf32>
    %181 = arith.addf %161, %180 : vector<2x8x16xf32>
    %182 = vector.extract_strided_slice %147 {offsets = [0, 0, 8], sizes = [2, 16, 8], strides = [1, 1, 1]} : vector<2x16x32xf32> to vector<2x16x8xf32>
    "tpu.trace_start"() <{level = 10 : i32, message = "bqk,bkd->bqd"}> : () -> ()
    %cst_64 = arith.constant dense<0.000000e+00> : vector<2x8x8xf32>
    %183 = tpu.matmul %180, %182, %cst_64 {dimension_numbers = #tpu.dot_dimension_numbers<[2], [1], [1], [2], [0, 0, 0, 1, 1, 2], [0], [0]>} : vector<2x8x16xf32>, vector<2x16x8xf32>, vector<2x8x8xf32> -> vector<2x8x8xf32>
    "tpu.trace_stop"() : () -> ()
    %184 = vector.shape_cast %183 : vector<2x8x8xf32> to vector<16x8xf32>
    %185 = vector.extract_strided_slice %143 {offsets = [8, 0], sizes = [8, 32], strides = [1, 1]} : vector<32x32xf32> to vector<8x32xf32>
    %cst_65 = arith.constant dense<0.000000e+00> : vector<16x32xf32>
    %186 = tpu.matmul %184, %185, %cst_65 {dimension_numbers = #tpu.dot_dimension_numbers<[1], [0], [0], [1], [0, 0, 1, 1], [], []>} : vector<16x8xf32>, vector<8x32xf32>, vector<16x32xf32> -> vector<16x32xf32>
    %187 = arith.addf %166, %186 : vector<16x32xf32>
    %188 = vector.extract_strided_slice %145 {offsets = [0, 0, 16], sizes = [2, 8, 8], strides = [1, 1, 1]} : vector<2x8x32xf32> to vector<2x8x8xf32>
    %189 = vector.extract_strided_slice %146 {offsets = [0, 0, 16], sizes = [2, 16, 8], strides = [1, 1, 1]} : vector<2x16x32xf32> to vector<2x16x8xf32>
    "tpu.trace_start"() <{level = 10 : i32, message = "bqd,bkd->bqk"}> : () -> ()
    %cst_66 = arith.constant dense<0.000000e+00> : vector<2x8x16xf32>
    %190 = tpu.matmul %188, %189, %cst_66 {dimension_numbers = #tpu.dot_dimension_numbers<[2], [2], [1], [1], [0, 0, 0, 1, 1, 1], [0], [0]>} : vector<2x8x8xf32>, vector<2x16x8xf32>, vector<2x8x16xf32> -> vector<2x8x16xf32>
    "tpu.trace_stop"() : () -> ()
    %cst_67 = arith.constant 0.353553385 : f32
    %191 = vector.broadcast %cst_67 : f32 to vector<2x8x16xf32>
    %192 = arith.mulf %190, %191 : vector<2x8x16xf32>
    %cst_68 = arith.constant dense<0xFF800000> : vector<2x8xf32>
    %193 = vector.multi_reduction <maximumf>, %192, %cst_68 [2] : vector<2x8x16xf32> to vector<2x8xf32>
    %194 = vector.shape_cast %193 : vector<2x8xf32> to vector<2x8x1xf32>
    %195 = vector.broadcast %194 : vector<2x8x1xf32> to vector<2x8x16xf32>
    %196 = arith.subf %192, %195 : vector<2x8x16xf32>
    %197 = math.exp %196 : vector<2x8x16xf32>
    %cst_69 = arith.constant dense<0.000000e+00> : vector<2x8xf32>
    %198 = vector.multi_reduction <add>, %197, %cst_69 [2] : vector<2x8x16xf32> to vector<2x8xf32>
    %199 = vector.shape_cast %198 : vector<2x8xf32> to vector<2x8x1xf32>
    %200 = vector.broadcast %199 : vector<2x8x1xf32> to vector<2x8x16xf32>
    %201 = arith.divf %197, %200 : vector<2x8x16xf32>
    %202 = arith.addf %181, %201 : vector<2x8x16xf32>
    %203 = vector.extract_strided_slice %147 {offsets = [0, 0, 16], sizes = [2, 16, 8], strides = [1, 1, 1]} : vector<2x16x32xf32> to vector<2x16x8xf32>
    "tpu.trace_start"() <{level = 10 : i32, message = "bqk,bkd->bqd"}> : () -> ()
    %cst_70 = arith.constant dense<0.000000e+00> : vector<2x8x8xf32>
    %204 = tpu.matmul %201, %203, %cst_70 {dimension_numbers = #tpu.dot_dimension_numbers<[2], [1], [1], [2], [0, 0, 0, 1, 1, 2], [0], [0]>} : vector<2x8x16xf32>, vector<2x16x8xf32>, vector<2x8x8xf32> -> vector<2x8x8xf32>
    "tpu.trace_stop"() : () -> ()
    %205 = vector.shape_cast %204 : vector<2x8x8xf32> to vector<16x8xf32>
    %206 = vector.extract_strided_slice %143 {offsets = [16, 0], sizes = [8, 32], strides = [1, 1]} : vector<32x32xf32> to vector<8x32xf32>
    %cst_71 = arith.constant dense<0.000000e+00> : vector<16x32xf32>
    %207 = tpu.matmul %205, %206, %cst_71 {dimension_numbers = #tpu.dot_dimension_numbers<[1], [0], [0], [1], [0, 0, 1, 1], [], []>} : vector<16x8xf32>, vector<8x32xf32>, vector<16x32xf32> -> vector<16x32xf32>
    %208 = arith.addf %187, %207 : vector<16x32xf32>
    %209 = vector.extract_strided_slice %145 {offsets = [0, 0, 24], sizes = [2, 8, 8], strides = [1, 1, 1]} : vector<2x8x32xf32> to vector<2x8x8xf32>
    %210 = vector.extract_strided_slice %146 {offsets = [0, 0, 24], sizes = [2, 16, 8], strides = [1, 1, 1]} : vector<2x16x32xf32> to vector<2x16x8xf32>
    "tpu.trace_start"() <{level = 10 : i32, message = "bqd,bkd->bqk"}> : () -> ()
    %cst_72 = arith.constant dense<0.000000e+00> : vector<2x8x16xf32>
    %211 = tpu.matmul %209, %210, %cst_72 {dimension_numbers = #tpu.dot_dimension_numbers<[2], [2], [1], [1], [0, 0, 0, 1, 1, 1], [0], [0]>} : vector<2x8x8xf32>, vector<2x16x8xf32>, vector<2x8x16xf32> -> vector<2x8x16xf32>
    "tpu.trace_stop"() : () -> ()
    %cst_73 = arith.constant 0.353553385 : f32
    %212 = vector.broadcast %cst_73 : f32 to vector<2x8x16xf32>
    %213 = arith.mulf %211, %212 : vector<2x8x16xf32>
    %cst_74 = arith.constant dense<0xFF800000> : vector<2x8xf32>
    %214 = vector.multi_reduction <maximumf>, %213, %cst_74 [2] : vector<2x8x16xf32> to vector<2x8xf32>
    %215 = vector.shape_cast %214 : vector<2x8xf32> to vector<2x8x1xf32>
    %216 = vector.broadcast %215 : vector<2x8x1xf32> to vector<2x8x16xf32>
    %217 = arith.subf %213, %216 : vector<2x8x16xf32>
    %218 = math.exp %217 : vector<2x8x16xf32>
    %cst_75 = arith.constant dense<0.000000e+00> : vector<2x8xf32>
    %219 = vector.multi_reduction <add>, %218, %cst_75 [2] : vector<2x8x16xf32> to vector<2x8xf32>
    %220 = vector.shape_cast %219 : vector<2x8xf32> to vector<2x8x1xf32>
    %221 = vector.broadcast %220 : vector<2x8x1xf32> to vector<2x8x16xf32>
    %222 = arith.divf %218, %221 : vector<2x8x16xf32>
    %223 = arith.addf %202, %222 : vector<2x8x16xf32>
    %224 = vector.extract_strided_slice %147 {offsets = [0, 0, 24], sizes = [2, 16, 8], strides = [1, 1, 1]} : vector<2x16x32xf32> to vector<2x16x8xf32>
    "tpu.trace_start"() <{level = 10 : i32, message = "bqk,bkd->bqd"}> : () -> ()
    %cst_76 = arith.constant dense<0.000000e+00> : vector<2x8x8xf32>
    %225 = tpu.matmul %222, %224, %cst_76 {dimension_numbers = #tpu.dot_dimension_numbers<[2], [1], [1], [2], [0, 0, 0, 1, 1, 2], [0], [0]>} : vector<2x8x16xf32>, vector<2x16x8xf32>, vector<2x8x8xf32> -> vector<2x8x8xf32>
    "tpu.trace_stop"() : () -> ()
    %226 = vector.shape_cast %225 : vector<2x8x8xf32> to vector<16x8xf32>
    %227 = vector.extract_strided_slice %143 {offsets = [24, 0], sizes = [8, 32], strides = [1, 1]} : vector<32x32xf32> to vector<8x32xf32>
    %cst_77 = arith.constant dense<0.000000e+00> : vector<16x32xf32>
    %228 = tpu.matmul %226, %227, %cst_77 {dimension_numbers = #tpu.dot_dimension_numbers<[1], [0], [0], [1], [0, 0, 1, 1], [], []>} : vector<16x8xf32>, vector<8x32xf32>, vector<16x32xf32> -> vector<16x32xf32>
    %229 = arith.addf %208, %228 : vector<16x32xf32>
    %230 = vector.broadcast %144 : vector<1x32xf32> to vector<16x32xf32>
    %231 = arith.addf %229, %230 : vector<16x32xf32>
    %cst_78 = arith.constant 2.500000e-01 : f32
    %232 = vector.broadcast %cst_78 : f32 to vector<2x8x16xf32>
    %233 = arith.mulf %223, %232 : vector<2x8x16xf32>
    %234 = arith.addf %127, %231 : vector<16x32xf32>
    %c8 = arith.constant 8 : index
    %c0_79 = arith.constant 0 : index
    %235 = vector.load %arg2[%c8, %c0_79] : memref<16x128xf32, #tpu.memory_space<vmem>>, vector<1x32xf32>
    %c11 = arith.constant 11 : index
    %c0_80 = arith.constant 0 : index
    %236 = vector.load %arg2[%c11, %c0_80] : memref<16x128xf32, #tpu.memory_space<vmem>>, vector<1x32xf32>
    %cst_81 = arith.constant dense<0.000000e+00> : vector<16xf32>
    %237 = vector.multi_reduction <add>, %234, %cst_81 [1] : vector<16x32xf32> to vector<16xf32>
    %238 = vector.shape_cast %237 : vector<16xf32> to vector<16x1xf32>
    %cst_82 = arith.constant 3.200000e+01 : f32
    %239 = vector.broadcast %cst_82 : f32 to vector<16x1xf32>
    %240 = arith.divf %238, %239 : vector<16x1xf32>
    %241 = vector.broadcast %240 : vector<16x1xf32> to vector<16x32xf32>
    %242 = arith.subf %234, %241 : vector<16x32xf32>
    %243 = arith.mulf %242, %242 : vector<16x32xf32>
    %cst_83 = arith.constant dense<0.000000e+00> : vector<16xf32>
    %244 = vector.multi_reduction <add>, %243, %cst_83 [1] : vector<16x32xf32> to vector<16xf32>
    %245 = vector.shape_cast %244 : vector<16xf32> to vector<16x1xf32>
    %cst_84 = arith.constant 3.200000e+01 : f32
    %246 = vector.broadcast %cst_84 : f32 to vector<16x1xf32>
    %247 = arith.divf %245, %246 : vector<16x1xf32>
    %248 = vector.broadcast %240 : vector<16x1xf32> to vector<16x32xf32>
    %249 = arith.subf %234, %248 : vector<16x32xf32>
    %cst_85 = arith.constant 9.99999974E-6 : f32
    %250 = vector.broadcast %cst_85 : f32 to vector<16x1xf32>
    %251 = arith.addf %247, %250 : vector<16x1xf32>
    %252 = math.rsqrt %251 : vector<16x1xf32>
    %253 = vector.broadcast %252 : vector<16x1xf32> to vector<16x32xf32>
    %254 = arith.mulf %249, %253 : vector<16x32xf32>
    %255 = vector.broadcast %235 : vector<1x32xf32> to vector<16x32xf32>
    %256 = arith.mulf %254, %255 : vector<16x32xf32>
    %257 = vector.broadcast %236 : vector<1x32xf32> to vector<16x32xf32>
    %258 = arith.addf %256, %257 : vector<16x32xf32>
    %c256 = arith.constant 256 : index
    %c0_86 = arith.constant 0 : index
    %259 = vector.load %arg1[%c256, %c0_86] : memref<352x128xf32, #tpu.memory_space<vmem>>, vector<32x64xf32>
    %cst_87 = arith.constant dense<0.000000e+00> : vector<16x64xf32>
    %260 = tpu.matmul %258, %259, %cst_87 {dimension_numbers = #tpu.dot_dimension_numbers<[1], [0], [0], [1], [0, 0, 1, 1], [], []>} : vector<16x32xf32>, vector<32x64xf32>, vector<16x64xf32> -> vector<16x64xf32>
    %c5 = arith.constant 5 : index
    %c0_88 = arith.constant 0 : index
    %261 = vector.load %arg2[%c5, %c0_88] : memref<16x128xf32, #tpu.memory_space<vmem>>, vector<1x64xf32>
    %262 = vector.broadcast %261 : vector<1x64xf32> to vector<16x64xf32>
    %263 = arith.addf %260, %262 : vector<16x64xf32>
    %cst_89 = arith.constant 0.000000e+00 : f32
    %264 = vector.broadcast %cst_89 : f32 to vector<16x64xf32>
    %265 = arith.maximumf %263, %264 : vector<16x64xf32>
    %c288 = arith.constant 288 : index
    %c0_90 = arith.constant 0 : index
    %266 = vector.load %arg1[%c288, %c0_90] : memref<352x128xf32, #tpu.memory_space<vmem>>, vector<64x32xf32>
    %cst_91 = arith.constant dense<0.000000e+00> : vector<16x32xf32>
    %267 = tpu.matmul %265, %266, %cst_91 {dimension_numbers = #tpu.dot_dimension_numbers<[1], [0], [0], [1], [0, 0, 1, 1], [], []>} : vector<16x64xf32>, vector<64x32xf32>, vector<16x32xf32> -> vector<16x32xf32>
    %c6 = arith.constant 6 : index
    %c0_92 = arith.constant 0 : index
    %268 = vector.load %arg2[%c6, %c0_92] : memref<16x128xf32, #tpu.memory_space<vmem>>, vector<1x32xf32>
    %269 = vector.broadcast %268 : vector<1x32xf32> to vector<16x32xf32>
    %270 = arith.addf %267, %269 : vector<16x32xf32>
    %271 = arith.addf %258, %270 : vector<16x32xf32>
    %c9 = arith.constant 9 : index
    %c0_93 = arith.constant 0 : index
    %272 = vector.load %arg2[%c9, %c0_93] : memref<16x128xf32, #tpu.memory_space<vmem>>, vector<1x32xf32>
    %c12 = arith.constant 12 : index
    %c0_94 = arith.constant 0 : index
    %273 = vector.load %arg2[%c12, %c0_94] : memref<16x128xf32, #tpu.memory_space<vmem>>, vector<1x32xf32>
    %cst_95 = arith.constant dense<0.000000e+00> : vector<16xf32>
    %274 = vector.multi_reduction <add>, %271, %cst_95 [1] : vector<16x32xf32> to vector<16xf32>
    %275 = vector.shape_cast %274 : vector<16xf32> to vector<16x1xf32>
    %cst_96 = arith.constant 3.200000e+01 : f32
    %276 = vector.broadcast %cst_96 : f32 to vector<16x1xf32>
    %277 = arith.divf %275, %276 : vector<16x1xf32>
    %278 = vector.broadcast %277 : vector<16x1xf32> to vector<16x32xf32>
    %279 = arith.subf %271, %278 : vector<16x32xf32>
    %280 = arith.mulf %279, %279 : vector<16x32xf32>
    %cst_97 = arith.constant dense<0.000000e+00> : vector<16xf32>
    %281 = vector.multi_reduction <add>, %280, %cst_97 [1] : vector<16x32xf32> to vector<16xf32>
    %282 = vector.shape_cast %281 : vector<16xf32> to vector<16x1xf32>
    %cst_98 = arith.constant 3.200000e+01 : f32
    %283 = vector.broadcast %cst_98 : f32 to vector<16x1xf32>
    %284 = arith.divf %282, %283 : vector<16x1xf32>
    %285 = vector.broadcast %277 : vector<16x1xf32> to vector<16x32xf32>
    %286 = arith.subf %271, %285 : vector<16x32xf32>
    %cst_99 = arith.constant 9.99999974E-6 : f32
    %287 = vector.broadcast %cst_99 : f32 to vector<16x1xf32>
    %288 = arith.addf %284, %287 : vector<16x1xf32>
    %289 = math.rsqrt %288 : vector<16x1xf32>
    %290 = vector.broadcast %289 : vector<16x1xf32> to vector<16x32xf32>
    %291 = arith.mulf %286, %290 : vector<16x32xf32>
    %292 = vector.broadcast %272 : vector<1x32xf32> to vector<16x32xf32>
    %293 = arith.mulf %291, %292 : vector<16x32xf32>
    %294 = vector.broadcast %273 : vector<1x32xf32> to vector<16x32xf32>
    %295 = arith.addf %293, %294 : vector<16x32xf32>
    %296 = vector.shape_cast %295 : vector<16x32xf32> to vector<2x8x32xf32>
    %c0_100 = arith.constant 0 : index
    %c0_101 = arith.constant 0 : index
    %c0_102 = arith.constant 0 : index
    %297 = vector.load %arg3[%c0_100, %c0_101, %c0_102] : memref<2x8x32xf32, #tpu.memory_space<vmem>>, vector<2x8x32xf32>
    tpu.vector_store %arg3[%c0_100, %c0_101, %c0_102], %296 {strides = array<i32>} : memref<2x8x32xf32, #tpu.memory_space<vmem>>, vector<2x8x32xf32>,
    %c0_103 = arith.constant 0 : index
    %c0_104 = arith.constant 0 : index
    %c0_105 = arith.constant 0 : index
    %298 = vector.load %arg4[%c0_103, %c0_104, %c0_105] : memref<2x8x16xf32, #tpu.memory_space<vmem>>, vector<2x8x16xf32>
    tpu.vector_store %arg4[%c0_103, %c0_104, %c0_105], %233 {strides = array<i32>} : memref<2x8x16xf32, #tpu.memory_space<vmem>>, vector<2x8x16xf32>,
    %c0_106 = arith.constant 0 : index
    %c0_107 = arith.constant 0 : index
    %c0_108 = arith.constant 0 : index
    %299 = vector.load %arg5[%c0_106, %c0_107, %c0_108] : memref<2x8x8xf32, #tpu.memory_space<vmem>>, vector<2x8x8xf32>
    tpu.vector_store %arg5[%c0_106, %c0_107, %c0_108], %102 {strides = array<i32>} : memref<2x8x8xf32, #tpu.memory_space<vmem>>, vector<2x8x8xf32>,
    return
  }
}

</mosaic_0001>

<llo_original>
// kernel: content_decoder_layer.1
$region0: #{content_decoder_layer.1}
  #allocation0 [shape = 'u32[]', space=smem, size = 0x4, offset = 0x4, fixed_abs, tag = 'smem constant byte address 0x4 - core index']
  #allocation1 [shape = 'u32[72,128]{1,0:T(1,128)}', space=vmem, size = 0x9000, scoped, tag = 'internal scratch']
  %s0 = inlined_call_operand.vmem [shape: f32[48,128], index: 0, kind: input, shape index: {}]
  %s1 = inlined_call_operand.hbm [shape: f32[352,128], index: 1, kind: input, shape index: {}]
  %s2 = inlined_call_operand.vmem [shape: f32[16,128], index: 2, kind: input, shape index: {}]
  %s3 = inlined_call_operand.hbm [shape: f32[2,8,32], index: 3, kind: output, shape index: {0}]
  %s4 = inlined_call_operand.hbm [shape: f32[2,8,16], index: 4, kind: output, shape index: {1}]
  %s5 = inlined_call_operand.hbm [shape: f32[2,8,8], index: 5, kind: output, shape index: {2}]
  %6 = xla_tuple %s3, %s4, %s5
  %s7 = sld [smem:[#allocation0]]
  $region42: #{content_decoder_layer.1} parent=0
    _
  %s9 = ssub.s32 1, %s7
  %s10 = scalar_select 0, %s9, %s7
  $region1: #{content_decoder_layer.1} parent=0
    #allocation2 [shape = 'u8[180224]{0}', space=vmem, size = 0x2c000, scoped, tag = 'input window, operand 1, single buffered']
    #allocation3 [shape = 's32[1]{0}', space=sflag, size = 0x4, scoped, tag = 'scoped memory for content_decoder_layer.1']
    #allocation4 [shape = 's32[1]{0}', space=sflag, size = 0x4, scoped, tag = 'scoped memory for content_decoder_layer.1']
    #allocation5 [shape = 'u8[8192]{0}', space=vmem, size = 0x2000, scoped, tag = 'output window, operand 0, single buffered']
    #allocation6 [shape = 'u8[8192]{0}', space=vmem, size = 0x2000, scoped, tag = 'output window, operand 1, single buffered']
    #allocation7 [shape = 's32[1]{0}', space=sflag, size = 0x4, scoped, tag = 'scoped memory for content_decoder_layer.1']
    #allocation8 [shape = 'u8[8192]{0}', space=vmem, size = 0x2000, scoped, tag = 'output window, operand 2, single buffered']
    %11 = vsyncpa [#allocation3], 0
    %12 = vsyncpa [#allocation4], 0
    %13 = vsyncpa [#allocation7], 0
    // Predicated region
    $region2: #{content_decoder_layer.1} parent=1 // pred_check
      _
    $region3: #{content_decoder_layer.1} parent=1 // pred_check_branch
      %15 = sbr.rel (0) target = $region5
    $region4: #{content_decoder_layer.1} parent=1 // pred_region
      _
    $region5: #{content_decoder_layer.1} parent=1 // pred_fallthru
      _
    // Predicated region
    $region6: #{content_decoder_layer.1} parent=1 // pred_check
      _
    $region7: #{content_decoder_layer.1} parent=1 // pred_check_branch
      %17 = sbr.rel (0) target = $region9
    $region8: #{content_decoder_layer.1} parent=1 // pred_region
      %19 = vsyncadd [#allocation3], 0
      %s20 = sshll.u32 %s1, 4
      %s21 = int_to_ptr.hbm [resolvable:$true] %s20
      %s22 = sshll.u32 [#allocation2], 4
      %s23 = int_to_ptr.vmem [resolvable:$true] %s22
      %28 = dma.hbm_to_vmem [thread:$0]  %s21, 5632, %s23, [#allocation3], 128, 128, 8
    $region9: #{content_decoder_layer.1} parent=1 // pred_fallthru
      _
    // Predicated region
    $region10: #{content_decoder_layer.1} parent=1 // pred_check
      _
    $region11: #{content_decoder_layer.1} parent=1 // pred_check_branch
      %30 = sbr.rel (0) target = $region13
    $region12: #{content_decoder_layer.1} parent=1 // pred_region
      _
    $region13: #{content_decoder_layer.1} parent=1 // pred_fallthru
      _
    // Predicated region
    $region14: #{content_decoder_layer.1} parent=1 // pred_check
      _
    $region15: #{content_decoder_layer.1} parent=1 // pred_check_branch
      %32 = sbr.rel (0) target = $region17
    $region16: #{content_decoder_layer.1} parent=1 // pred_region
      %34 = dma.done [#allocation3], 5632
    $region17: #{content_decoder_layer.1} parent=1 // pred_fallthru
      _
    %v35 = vld [vmem:[%s0] sm:$0xff]
    %v36 = vld [vmem:[%s0 + $0x8] sm:$0xff]
    %v37 = vld [vmem:[%s0 + $0x10] sm:$0xff]
    %v38 = vld [vmem:[%s0 + $0x18] sm:$0xff]
    %v39 = vld [vmem:[%s0 + $0x20] sm:$0xff]
    %v40 = vld [vmem:[%s0 + $0x28] sm:$0xff]
    %v41 = vld [vmem:[#allocation2] sm:$0xff]
    %v42 = vld [vmem:[#allocation2 + $0x8] sm:$0xff]
    %v43 = vld [vmem:[#allocation2 + $0x10] sm:$0xff]
    %v44 = vld [vmem:[#allocation2 + $0x18] sm:$0xff]
    %v45 = vld [vmem:[#allocation2 + $0x20] sm:$0xff]
    %v46 = vld [vmem:[#allocation2 + $0x28] sm:$0xff]
    %v47 = vld [vmem:[#allocation2 + $0x30] sm:$0xff]
    %v48 = vld [vmem:[#allocation2 + $0x38] sm:$0xff]
    %v49 = vld [vmem:[%s2] sm:$0x1]
    %v50 = vperm.slane %v49, 0
    %vm51 = vcmask 523264
    %v53 = vsel %vm51, %v35, 0
    %v56 = vsel %vm51, %v36, 0
    %58 = vmatpush.msra.mxu0 0.0
    %59 = vmatpush.msra.mxu0 0.0
    %60 = vmatpush.msra.mxu0 0.0
    %61 = vmatpush.msra.mxu0 0.0
    %62 = vmatpush.msra.mxu0 0.0
    %63 = vmatpush.msra.mxu0 0.0
    %64 = vmatpush.msra.mxu0 0.0
    %65 = vmatpush.msra.mxu0 0.0
    %66 = vmatpush.msra.mxu0 %v48
    %67 = vmatpush.msra.mxu0 %v47
    %68 = vmatpush.msra.mxu0 %v46
    %69 = vmatpush.msra.mxu0 %v45
    %70 = vmatpush.msra.mxu0 %v44
    %71 = vmatpush.msra.mxu0 %v43
    %72 = vmatpush.msra.mxu0 %v42
    %73 = vmatpush.msra.mxu0 %v41
    %74 = vmatmul.f32.gmra.mxu0 %v53
    %v75 = vpop.f32.mrf.mxu0
    %v76 = vadd.f32 %v50, %v75
    %77 = vmatmul.f32.gmra.mxu0 %v56
    %v78 = vpop.f32.mrf.mxu0
    %v79 = vadd.f32 %v50, %v78
    %80 = vdwg.mxu0
    %v81 = vld [vmem:[#allocation2 + $0x40] sm:$0xff]
    %v82 = vld [vmem:[#allocation2 + $0x48] sm:$0xff]
    %v83 = vld [vmem:[#allocation2 + $0x50] sm:$0xff]
    %v84 = vld [vmem:[#allocation2 + $0x58] sm:$0xff]
    %v85 = vld [vmem:[%s2 + $0x1] sm:$0x1]
    %87 = vrot.lane.b32.xlu0 %v76, 96
    %v88 = vpop.permute.xlu0 %87
    %vm89 = vcmask 64512
    %v90 = vsel %vm89, %v76, 0
    %v92 = vsel %vm89, %v88, 0
    %94 = vmatpush.xpose.msra.mxu0 0.0
    %95 = vmatpush.xpose.msra.mxu0 0.0
    %96 = vmatpush.xpose.msra.mxu0 0.0
    %97 = vmatpush.xpose.msra.mxu0 0.0
    %98 = vmatpush.xpose.msra.mxu0 0.0
    %99 = vmatpush.xpose.msra.mxu0 0.0
    %100 = vmatpush.xpose.msra.mxu0 0.0
    %101 = vmatpush.xpose.msra.mxu0 0.0
    %102 = vmatpush.xpose.msra.mxu0 0.0
    %103 = vmatpush.xpose.msra.mxu0 0.0
    %104 = vmatpush.xpose.msra.mxu0 0.0
    %105 = vmatpush.xpose.msra.mxu0 0.0
    %106 = vmatpush.xpose.msra.mxu0 0.0
    %107 = vmatpush.xpose.msra.mxu0 0.0
    %108 = vmatpush.xpose.msra.mxu0 0.0
    %109 = vmatpush.xpose.msra.mxu0 %v92
    %110 = vmatmul.f32.gmra.mxu0 %v90
    %v111 = vpop.f32.mrf.mxu0
    %v112 = vadd.f32 0.0, %v111
    %113 = vdwg.mxu0
    %115 = vrot.lane.b32.xlu0 %v79, 96
    %v116 = vpop.permute.xlu0 %115
    %v117 = vsel %vm89, %v79, 0
    %v119 = vsel %vm89, %v116, 0
    %121 = vmatpush.xpose.msra.mxu0 0.0
    %122 = vmatpush.xpose.msra.mxu0 0.0
    %123 = vmatpush.xpose.msra.mxu0 0.0
    %124 = vmatpush.xpose.msra.mxu0 0.0
    %125 = vmatpush.xpose.msra.mxu0 0.0
    %126 = vmatpush.xpose.msra.mxu0 0.0
    %127 = vmatpush.xpose.msra.mxu0 0.0
    %128 = vmatpush.xpose.msra.mxu0 0.0
    %129 = vmatpush.xpose.msra.mxu0 0.0
    %130 = vmatpush.xpose.msra.mxu0 0.0
    %131 = vmatpush.xpose.msra.mxu0 0.0
    %132 = vmatpush.xpose.msra.mxu0 0.0
    %133 = vmatpush.xpose.msra.mxu0 0.0
    %134 = vmatpush.xpose.msra.mxu0 0.0
    %135 = vmatpush.xpose.msra.mxu0 0.0
    %136 = vmatpush.xpose.msra.mxu0 %v119
    %137 = vmatmul.f32.gmra.mxu0 %v117
    %v138 = vpop.f32.mrf.mxu0
    %v139 = vadd.f32 0.0, %v138
    %140 = vdwg.mxu0
    %v141 = vmul.f32 %v112, 0.35355338
    %v142 = vmul.f32 %v139, 0.35355338
    %v143 = vsel %vm89, %v141, -inf
    %144 = vmax.xlane.f32.xlu0 %v143
    %v145 = vpop.xlane.xlu0 %144
    %v146 = vsel %vm89, %v142, -inf
    %147 = vmax.xlane.f32.xlu0 %v146
    %v148 = vpop.xlane.xlu0 %147
    %v149 = vsub.f32 %v141, %v145
    %v150 = vsub.f32 %v142, %v148
    %v151 = vmul.f32 %v149, 1.442695
    %v152 = vpow.pop %v151
    %v153 = vmul.f32 %v150, 1.442695
    %v154 = vpow.pop %v153
    %v155 = vsel %vm89, %v152, 0.0
    %156 = vadd.xlane.f32.xlu0 %v155
    %v157 = vpop.xlane.xlu0 %156
    %v158 = vsel %vm89, %v154, 0.0
    %159 = vadd.xlane.f32.xlu0 %v158
    %v160 = vpop.xlane.xlu0 %159
    %v161 = vrcp.pop %v157
    %v162 = vmul.f32 %v157, %v161
    %v163 = vsub.f32 1.0, %v162
    %v164 = vmul.f32 %v161, %v163
    %v165 = vadd.f32 %v161, %v164
    %vm166 = vweird.f32 %v157
    %vm167 = vweird.f32 %v161
    %vm168 = vmor %vm166, %vm167
    %v169 = vsel %vm168, %v161, %v165
    %v170 = vand.u32 2147483647, %v157
    %vm171 = vcmp.eq.f32.partialorder %v170, 8.507059e+37
    %v172 = vand.u32 %v157, 2147483648
    %v173 = vor.u32 1.1754944e-38, %v172
    %v174 = vsel %vm171, %v173, %v169
    %v175 = vmul.f32 %v152, %v174
    %v176 = vrcp.pop %v160
    %v177 = vmul.f32 %v160, %v176
    %v178 = vsub.f32 1.0, %v177
    %v179 = vmul.f32 %v176, %v178
    %v180 = vadd.f32 %v176, %v179
    %vm181 = vweird.f32 %v160
    %vm182 = vweird.f32 %v176
    %vm183 = vmor %vm181, %vm182
    %v184 = vsel %vm183, %v176, %v180
    %v185 = vand.u32 2147483647, %v160
    %vm186 = vcmp.eq.f32.partialorder %v185, 8.507059e+37
    %v187 = vand.u32 %v160, 2147483648
    %v188 = vor.u32 1.1754944e-38, %v187
    %v189 = vsel %vm186, %v188, %v184
    %v190 = vmul.f32 %v154, %v189
    %191 = vrot.lane.b32.xlu0 %v76, 64
    %v192 = vpop.permute.xlu0 %191
    %v195 = vsel %vm89, %v175, 0
    %197 = vmatpush.msra.mxu0 0.0
    %198 = vmatpush.msra.mxu0 0.0
    %199 = vmatpush.msra.mxu0 0.0
    %200 = vmatpush.msra.mxu0 0.0
    %201 = vmatpush.msra.mxu0 0.0
    %202 = vmatpush.msra.mxu0 0.0
    %203 = vmatpush.msra.mxu0 0.0
    %204 = vmatpush.msra.mxu0 0.0
    %205 = vmatpush.msra.mxu0 0.0
    %206 = vmatpush.msra.mxu0 0.0
    %207 = vmatpush.msra.mxu0 0.0
    %208 = vmatpush.msra.mxu0 0.0
    %209 = vmatpush.msra.mxu0 0.0
    %210 = vmatpush.msra.mxu0 0.0
    %211 = vmatpush.msra.mxu0 0.0
    %212 = vmatpush.msra.mxu0 %v192
    %213 = vmatmul.f32.gmra.mxu0 %v195
    %v214 = vpop.f32.mrf.mxu0
    %v215 = vadd.f32 0.0, %v214
    %216 = vdwg.mxu0
    %217 = vrot.lane.b32.xlu0 %v79, 64
    %v218 = vpop.permute.xlu0 %217
    %v221 = vsel %vm89, %v190, 0
    %223 = vmatpush.msra.mxu0 0.0
    %224 = vmatpush.msra.mxu0 0.0
    %225 = vmatpush.msra.mxu0 0.0
    %226 = vmatpush.msra.mxu0 0.0
    %227 = vmatpush.msra.mxu0 0.0
    %228 = vmatpush.msra.mxu0 0.0
    %229 = vmatpush.msra.mxu0 0.0
    %230 = vmatpush.msra.mxu0 0.0
    %231 = vmatpush.msra.mxu0 0.0
    %232 = vmatpush.msra.mxu0 0.0
    %233 = vmatpush.msra.mxu0 0.0
    %234 = vmatpush.msra.mxu0 0.0
    %235 = vmatpush.msra.mxu0 0.0
    %236 = vmatpush.msra.mxu0 0.0
    %237 = vmatpush.msra.mxu0 0.0
    %238 = vmatpush.msra.mxu0 %v218
    %239 = vmatmul.f32.gmra.mxu0 %v221
    %v240 = vpop.f32.mrf.mxu0
    %v241 = vadd.f32 0.0, %v240
    %242 = vdwg.mxu0
    %243 = vrot.lane.b32.xlu0 %v76, 120
    %v244 = vpop.permute.xlu0 %243
    %245 = vrot.lane.b32.xlu0 %v76, 88
    %v246 = vpop.permute.xlu0 %245
    %v247 = vsel %vm89, %v244, 0
    %v249 = vsel %vm89, %v246, 0
    %251 = vmatpush.xpose.msra.mxu0 0.0
    %252 = vmatpush.xpose.msra.mxu0 0.0
    %253 = vmatpush.xpose.msra.mxu0 0.0
    %254 = vmatpush.xpose.msra.mxu0 0.0
    %255 = vmatpush.xpose.msra.mxu0 0.0
    %256 = vmatpush.xpose.msra.mxu0 0.0
    %257 = vmatpush.xpose.msra.mxu0 0.0
    %258 = vmatpush.xpose.msra.mxu0 0.0
    %259 = vmatpush.xpose.msra.mxu0 0.0
    %260 = vmatpush.xpose.msra.mxu0 0.0
    %261 = vmatpush.xpose.msra.mxu0 0.0
    %262 = vmatpush.xpose.msra.mxu0 0.0
    %263 = vmatpush.xpose.msra.mxu0 0.0
    %264 = vmatpush.xpose.msra.mxu0 0.0
    %265 = vmatpush.xpose.msra.mxu0 0.0
    %266 = vmatpush.xpose.msra.mxu0 %v249
    %267 = vmatmul.f32.gmra.mxu0 %v247
    %v268 = vpop.f32.mrf.mxu0
    %v269 = vadd.f32 0.0, %v268
    %270 = vdwg.mxu0
    %271 = vrot.lane.b32.xlu0 %v79, 120
    %v272 = vpop.permute.xlu0 %271
    %273 = vrot.lane.b32.xlu0 %v79, 88
    %v274 = vpop.permute.xlu0 %273
    %v275 = vsel %vm89, %v272, 0
    %v277 = vsel %vm89, %v274, 0
    %279 = vmatpush.xpose.msra.mxu0 0.0
    %280 = vmatpush.xpose.msra.mxu0 0.0
    %281 = vmatpush.xpose.msra.mxu0 0.0
    %282 = vmatpush.xpose.msra.mxu0 0.0
    %283 = vmatpush.xpose.msra.mxu0 0.0
    %284 = vmatpush.xpose.msra.mxu0 0.0
    %285 = vmatpush.xpose.msra.mxu0 0.0
    %286 = vmatpush.xpose.msra.mxu0 0.0
    %287 = vmatpush.xpose.msra.mxu0 0.0
    %288 = vmatpush.xpose.msra.mxu0 0.0
    %289 = vmatpush.xpose.msra.mxu0 0.0
    %290 = vmatpush.xpose.msra.mxu0 0.0
    %291 = vmatpush.xpose.msra.mxu0 0.0
    %292 = vmatpush.xpose.msra.mxu0 0.0
    %293 = vmatpush.xpose.msra.mxu0 0.0
    %294 = vmatpush.xpose.msra.mxu0 %v277
    %295 = vmatmul.f32.gmra.mxu0 %v275
    %v296 = vpop.f32.mrf.mxu0
    %v297 = vadd.f32 0.0, %v296
    %298 = vdwg.mxu0
    %v299 = vmul.f32 %v269, 0.35355338
    %v300 = vmul.f32 %v297, 0.35355338
    %v301 = vsel %vm89, %v299, -inf
    %302 = vmax.xlane.f32.xlu0 %v301
    %v303 = vpop.xlane.xlu0 %302
    %v304 = vsel %vm89, %v300, -inf
    %305 = vmax.xlane.f32.xlu0 %v304
    %v306 = vpop.xlane.xlu0 %305
    %v307 = vsub.f32 %v299, %v303
    %v308 = vsub.f32 %v300, %v306
    %v309 = vmul.f32 %v307, 1.442695
    %v310 = vpow.pop %v309
    %v311 = vmul.f32 %v308, 1.442695
    %v312 = vpow.pop %v311
    %v313 = vsel %vm89, %v310, 0.0
    %314 = vadd.xlane.f32.xlu0 %v313
    %v315 = vpop.xlane.xlu0 %314
    %v316 = vsel %vm89, %v312, 0.0
    %317 = vadd.xlane.f32.xlu0 %v316
    %v318 = vpop.xlane.xlu0 %317
    %v319 = vrcp.pop %v315
    %v320 = vmul.f32 %v315, %v319
    %v321 = vsub.f32 1.0, %v320
    %v322 = vmul.f32 %v319, %v321
    %v323 = vadd.f32 %v319, %v322
    %vm324 = vweird.f32 %v315
    %vm325 = vweird.f32 %v319
    %vm326 = vmor %vm324, %vm325
    %v327 = vsel %vm326, %v319, %v323
    %v328 = vand.u32 2147483647, %v315
    %vm329 = vcmp.eq.f32.partialorder %v328, 8.507059e+37
    %v330 = vand.u32 %v315, 2147483648
    %v331 = vor.u32 1.1754944e-38, %v330
    %v332 = vsel %vm329, %v331, %v327
    %v333 = vmul.f32 %v310, %v332
    %v334 = vrcp.pop %v318
    %v335 = vmul.f32 %v318, %v334
    %v336 = vsub.f32 1.0, %v335
    %v337 = vmul.f32 %v334, %v336
    %v338 = vadd.f32 %v334, %v337
    %vm339 = vweird.f32 %v318
    %vm340 = vweird.f32 %v334
    %vm341 = vmor %vm339, %vm340
    %v342 = vsel %vm341, %v334, %v338
    %v343 = vand.u32 2147483647, %v318
    %vm344 = vcmp.eq.f32.partialorder %v343, 8.507059e+37
    %v345 = vand.u32 %v318, 2147483648
    %v346 = vor.u32 1.1754944e-38, %v345
    %v347 = vsel %vm344, %v346, %v342
    %v348 = vmul.f32 %v312, %v347
    %v349 = vadd.f32 %v175, %v333
    %v350 = vadd.f32 %v190, %v348
    %351 = vrot.lane.b32.xlu0 %v76, 56
    %v352 = vpop.permute.xlu0 %351
    %v355 = vsel %vm89, %v333, 0
    %357 = vmatpush.msra.mxu0 0.0
    %358 = vmatpush.msra.mxu0 0.0
    %359 = vmatpush.msra.mxu0 0.0
    %360 = vmatpush.msra.mxu0 0.0
    %361 = vmatpush.msra.mxu0 0.0
    %362 = vmatpush.msra.mxu0 0.0
    %363 = vmatpush.msra.mxu0 0.0
    %364 = vmatpush.msra.mxu0 0.0
    %365 = vmatpush.msra.mxu0 0.0
    %366 = vmatpush.msra.mxu0 0.0
    %367 = vmatpush.msra.mxu0 0.0
    %368 = vmatpush.msra.mxu0 0.0
    %369 = vmatpush.msra.mxu0 0.0
    %370 = vmatpush.msra.mxu0 0.0
    %371 = vmatpush.msra.mxu0 0.0
    %372 = vmatpush.msra.mxu0 %v352
    %373 = vmatmul.f32.gmra.mxu0 %v355
    %v374 = vpop.f32.mrf.mxu0
    %v375 = vadd.f32 0.0, %v374
    %376 = vdwg.mxu0
    %377 = vrot.lane.b32.xlu0 %v79, 56
    %v378 = vpop.permute.xlu0 %377
    %v381 = vsel %vm89, %v348, 0
    %383 = vmatpush.msra.mxu0 0.0
    %384 = vmatpush.msra.mxu0 0.0
    %385 = vmatpush.msra.mxu0 0.0
    %386 = vmatpush.msra.mxu0 0.0
    %387 = vmatpush.msra.mxu0 0.0
    %388 = vmatpush.msra.mxu0 0.0
    %389 = vmatpush.msra.mxu0 0.0
    %390 = vmatpush.msra.mxu0 0.0
    %391 = vmatpush.msra.mxu0 0.0
    %392 = vmatpush.msra.mxu0 0.0
    %393 = vmatpush.msra.mxu0 0.0
    %394 = vmatpush.msra.mxu0 0.0
    %395 = vmatpush.msra.mxu0 0.0
    %396 = vmatpush.msra.mxu0 0.0
    %397 = vmatpush.msra.mxu0 0.0
    %398 = vmatpush.msra.mxu0 %v378
    %399 = vmatmul.f32.gmra.mxu0 %v381
    %v400 = vpop.f32.mrf.mxu0
    %v401 = vadd.f32 0.0, %v400
    %402 = vdwg.mxu0
    %v404 = vsel %vm89, %v375, 0
    %v407 = vsel %vm89, %v401, 0
    %409 = vmatpush.msra.mxu0 0.0
    %410 = vmatpush.msra.mxu0 0.0
    %411 = vmatpush.msra.mxu0 0.0
    %412 = vmatpush.msra.mxu0 0.0
    %413 = vmatpush.msra.mxu0 0.0
    %414 = vmatpush.msra.mxu0 0.0
    %415 = vmatpush.msra.mxu0 0.0
    %416 = vmatpush.msra.mxu0 0.0
    %417 = vmatpush.msra.mxu0 0.0
    %418 = vmatpush.msra.mxu0 0.0
    %419 = vmatpush.msra.mxu0 0.0
    %420 = vmatpush.msra.mxu0 0.0
    %421 = vmatpush.msra.mxu0 0.0
    %422 = vmatpush.msra.mxu0 0.0
    %423 = vmatpush.msra.mxu0 0.0
    %424 = vmatpush.msra.mxu0 %v82
    %425 = vmatmul.f32.gmra.mxu0 %v404
    %v426 = vpop.f32.mrf.mxu0
    %v427 = vadd.f32 0.0, %v426
    %428 = vmatmul.f32.gmra.mxu0 %v407
    %v429 = vpop.f32.mrf.mxu0
    %v430 = vadd.f32 0.0, %v429
    %431 = vdwg.mxu0
    %v433 = vsel %vm89, %v215, 0
    %v436 = vsel %vm89, %v241, 0
    %438 = vmatpush.msra.mxu0 0.0
    %439 = vmatpush.msra.mxu0 0.0
    %440 = vmatpush.msra.mxu0 0.0
    %441 = vmatpush.msra.mxu0 0.0
    %442 = vmatpush.msra.mxu0 0.0
    %443 = vmatpush.msra.mxu0 0.0
    %444 = vmatpush.msra.mxu0 0.0
    %445 = vmatpush.msra.mxu0 0.0
    %446 = vmatpush.msra.mxu0 0.0
    %447 = vmatpush.msra.mxu0 0.0
    %448 = vmatpush.msra.mxu0 0.0
    %449 = vmatpush.msra.mxu0 0.0
    %450 = vmatpush.msra.mxu0 0.0
    %451 = vmatpush.msra.mxu0 0.0
    %452 = vmatpush.msra.mxu0 0.0
    %453 = vmatpush.msra.mxu0 %v81
    %454 = vmatmul.f32.gmra.mxu0 %v433
    %v455 = vpop.f32.mrf.mxu0
    %v456 = vadd.f32 %v427, %v455
    %457 = vmatmul.f32.gmra.mxu0 %v436
    %v458 = vpop.f32.mrf.mxu0
    %v459 = vadd.f32 %v430, %v458
    %460 = vdwg.mxu0
    %461 = vrot.lane.b32.xlu0 %v76, 112
    %v462 = vpop.permute.xlu0 %461
    %463 = vrot.lane.b32.xlu0 %v76, 80
    %v464 = vpop.permute.xlu0 %463
    %v465 = vsel %vm89, %v462, 0
    %v467 = vsel %vm89, %v464, 0
    %469 = vmatpush.xpose.msra.mxu0 0.0
    %470 = vmatpush.xpose.msra.mxu0 0.0
    %471 = vmatpush.xpose.msra.mxu0 0.0
    %472 = vmatpush.xpose.msra.mxu0 0.0
    %473 = vmatpush.xpose.msra.mxu0 0.0
    %474 = vmatpush.xpose.msra.mxu0 0.0
    %475 = vmatpush.xpose.msra.mxu0 0.0
    %476 = vmatpush.xpose.msra.mxu0 0.0
    %477 = vmatpush.xpose.msra.mxu0 0.0
    %478 = vmatpush.xpose.msra.mxu0 0.0
    %479 = vmatpush.xpose.msra.mxu0 0.0
    %480 = vmatpush.xpose.msra.mxu0 0.0
    %481 = vmatpush.xpose.msra.mxu0 0.0
    %482 = vmatpush.xpose.msra.mxu0 0.0
    %483 = vmatpush.xpose.msra.mxu0 0.0
    %484 = vmatpush.xpose.msra.mxu0 %v467
    %485 = vmatmul.f32.gmra.mxu0 %v465
    %v486 = vpop.f32.mrf.mxu0
    %v487 = vadd.f32 0.0, %v486
    %488 = vdwg.mxu0
    %489 = vrot.lane.b32.xlu0 %v79, 112
    %v490 = vpop.permute.xlu0 %489
    %491 = vrot.lane.b32.xlu0 %v79, 80
    %v492 = vpop.permute.xlu0 %491
    %v493 = vsel %vm89, %v490, 0
    %v495 = vsel %vm89, %v492, 0
    %497 = vmatpush.xpose.msra.mxu0 0.0
    %498 = vmatpush.xpose.msra.mxu0 0.0
    %499 = vmatpush.xpose.msra.mxu0 0.0
    %500 = vmatpush.xpose.msra.mxu0 0.0
    %501 = vmatpush.xpose.msra.mxu0 0.0
    %502 = vmatpush.xpose.msra.mxu0 0.0
    %503 = vmatpush.xpose.msra.mxu0 0.0
    %504 = vmatpush.xpose.msra.mxu0 0.0
    %505 = vmatpush.xpose.msra.mxu0 0.0
    %506 = vmatpush.xpose.msra.mxu0 0.0
    %507 = vmatpush.xpose.msra.mxu0 0.0
    %508 = vmatpush.xpose.msra.mxu0 0.0
    %509 = vmatpush.xpose.msra.mxu0 0.0
    %510 = vmatpush.xpose.msra.mxu0 0.0
    %511 = vmatpush.xpose.msra.mxu0 0.0
    %512 = vmatpush.xpose.msra.mxu0 %v495
    %513 = vmatmul.f32.gmra.mxu0 %v493
    %v514 = vpop.f32.mrf.mxu0
    %v515 = vadd.f32 0.0, %v514
    %516 = vdwg.mxu0
    %v517 = vmul.f32 %v487, 0.35355338
    %v518 = vmul.f32 %v515, 0.35355338
    %v519 = vsel %vm89, %v517, -inf
    %520 = vmax.xlane.f32.xlu0 %v519
    %v521 = vpop.xlane.xlu0 %520
    %v522 = vsel %vm89, %v518, -inf
    %523 = vmax.xlane.f32.xlu0 %v522
    %v524 = vpop.xlane.xlu0 %523
    %v525 = vsub.f32 %v517, %v521
    %v526 = vsub.f32 %v518, %v524
    %v527 = vmul.f32 %v525, 1.442695
    %v528 = vpow.pop %v527
    %v529 = vmul.f32 %v526, 1.442695
    %v530 = vpow.pop %v529
    %v531 = vsel %vm89, %v528, 0.0
    %532 = vadd.xlane.f32.xlu0 %v531
    %v533 = vpop.xlane.xlu0 %532
    %v534 = vsel %vm89, %v530, 0.0
    %535 = vadd.xlane.f32.xlu0 %v534
    %v536 = vpop.xlane.xlu0 %535
    %v537 = vrcp.pop %v533
    %v538 = vmul.f32 %v533, %v537
    %v539 = vsub.f32 1.0, %v538
    %v540 = vmul.f32 %v537, %v539
    %v541 = vadd.f32 %v537, %v540
    %vm542 = vweird.f32 %v533
    %vm543 = vweird.f32 %v537
    %vm544 = vmor %vm542, %vm543
    %v545 = vsel %vm544, %v537, %v541
    %v546 = vand.u32 2147483647, %v533
    %vm547 = vcmp.eq.f32.partialorder %v546, 8.507059e+37
    %v548 = vand.u32 %v533, 2147483648
    %v549 = vor.u32 1.1754944e-38, %v548
    %v550 = vsel %vm547, %v549, %v545
    %v551 = vmul.f32 %v528, %v550
    %v552 = vrcp.pop %v536
    %v553 = vmul.f32 %v536, %v552
    %v554 = vsub.f32 1.0, %v553
    %v555 = vmul.f32 %v552, %v554
    %v556 = vadd.f32 %v552, %v555
    %vm557 = vweird.f32 %v536
    %vm558 = vweird.f32 %v552
    %vm559 = vmor %vm557, %vm558
    %v560 = vsel %vm559, %v552, %v556
    %v561 = vand.u32 2147483647, %v536
    %vm562 = vcmp.eq.f32.partialorder %v561, 8.507059e+37
    %v563 = vand.u32 %v536, 2147483648
    %v564 = vor.u32 1.1754944e-38, %v563
    %v565 = vsel %vm562, %v564, %v560
    %v566 = vmul.f32 %v530, %v565
    %v567 = vadd.f32 %v349, %v551
    %v568 = vadd.f32 %v350, %v566
    %569 = vrot.lane.b32.xlu0 %v76, 48
    %v570 = vpop.permute.xlu0 %569
    %v573 = vsel %vm89, %v551, 0
    %575 = vmatpush.msra.mxu0 0.0
    %576 = vmatpush.msra.mxu0 0.0
    %577 = vmatpush.msra.mxu0 0.0
    %578 = vmatpush.msra.mxu0 0.0
    %579 = vmatpush.msra.mxu0 0.0
    %580 = vmatpush.msra.mxu0 0.0
    %581 = vmatpush.msra.mxu0 0.0
    %582 = vmatpush.msra.mxu0 0.0
    %583 = vmatpush.msra.mxu0 0.0
    %584 = vmatpush.msra.mxu0 0.0
    %585 = vmatpush.msra.mxu0 0.0
    %586 = vmatpush.msra.mxu0 0.0
    %587 = vmatpush.msra.mxu0 0.0
    %588 = vmatpush.msra.mxu0 0.0
    %589 = vmatpush.msra.mxu0 0.0
    %590 = vmatpush.msra.mxu0 %v570
    %591 = vmatmul.f32.gmra.mxu0 %v573
    %v592 = vpop.f32.mrf.mxu0
    %v593 = vadd.f32 0.0, %v592
    %594 = vdwg.mxu0
    %595 = vrot.lane.b32.xlu0 %v79, 48
    %v596 = vpop.permute.xlu0 %595
    %v599 = vsel %vm89, %v566, 0
    %601 = vmatpush.msra.mxu0 0.0
    %602 = vmatpush.msra.mxu0 0.0
    %603 = vmatpush.msra.mxu0 0.0
    %604 = vmatpush.msra.mxu0 0.0
    %605 = vmatpush.msra.mxu0 0.0
    %606 = vmatpush.msra.mxu0 0.0
    %607 = vmatpush.msra.mxu0 0.0
    %608 = vmatpush.msra.mxu0 0.0
    %609 = vmatpush.msra.mxu0 0.0
    %610 = vmatpush.msra.mxu0 0.0
    %611 = vmatpush.msra.mxu0 0.0
    %612 = vmatpush.msra.mxu0 0.0
    %613 = vmatpush.msra.mxu0 0.0
    %614 = vmatpush.msra.mxu0 0.0
    %615 = vmatpush.msra.mxu0 0.0
    %616 = vmatpush.msra.mxu0 %v596
    %617 = vmatmul.f32.gmra.mxu0 %v599
    %v618 = vpop.f32.mrf.mxu0
    %v619 = vadd.f32 0.0, %v618
    %620 = vdwg.mxu0
    %v622 = vsel %vm89, %v593, 0
    %v625 = vsel %vm89, %v619, 0
    %627 = vmatpush.msra.mxu0 0.0
    %628 = vmatpush.msra.mxu0 0.0
    %629 = vmatpush.msra.mxu0 0.0
    %630 = vmatpush.msra.mxu0 0.0
    %631 = vmatpush.msra.mxu0 0.0
    %632 = vmatpush.msra.mxu0 0.0
    %633 = vmatpush.msra.mxu0 0.0
    %634 = vmatpush.msra.mxu0 0.0
    %635 = vmatpush.msra.mxu0 0.0
    %636 = vmatpush.msra.mxu0 0.0
    %637 = vmatpush.msra.mxu0 0.0
    %638 = vmatpush.msra.mxu0 0.0
    %639 = vmatpush.msra.mxu0 0.0
    %640 = vmatpush.msra.mxu0 0.0
    %641 = vmatpush.msra.mxu0 0.0
    %642 = vmatpush.msra.mxu0 %v83
    %643 = vmatmul.f32.gmra.mxu0 %v622
    %v644 = vpop.f32.mrf.mxu0
    %v645 = vadd.f32 0.0, %v644
    %646 = vmatmul.f32.gmra.mxu0 %v625
    %v647 = vpop.f32.mrf.mxu0
    %v648 = vadd.f32 0.0, %v647
    %649 = vdwg.mxu0
    %v650 = vadd.f32 %v456, %v645
    %v651 = vadd.f32 %v459, %v648
    %652 = vrot.lane.b32.xlu0 %v76, 104
    %v653 = vpop.permute.xlu0 %652
    %654 = vrot.lane.b32.xlu0 %v76, 72
    %v655 = vpop.permute.xlu0 %654
    %v656 = vsel %vm89, %v653, 0
    %v658 = vsel %vm89, %v655, 0
    %660 = vmatpush.xpose.msra.mxu0 0.0
    %661 = vmatpush.xpose.msra.mxu0 0.0
    %662 = vmatpush.xpose.msra.mxu0 0.0
    %663 = vmatpush.xpose.msra.mxu0 0.0
    %664 = vmatpush.xpose.msra.mxu0 0.0
    %665 = vmatpush.xpose.msra.mxu0 0.0
    %666 = vmatpush.xpose.msra.mxu0 0.0
    %667 = vmatpush.xpose.msra.mxu0 0.0
    %668 = vmatpush.xpose.msra.mxu0 0.0
    %669 = vmatpush.xpose.msra.mxu0 0.0
    %670 = vmatpush.xpose.msra.mxu0 0.0
    %671 = vmatpush.xpose.msra.mxu0 0.0
    %672 = vmatpush.xpose.msra.mxu0 0.0
    %673 = vmatpush.xpose.msra.mxu0 0.0
    %674 = vmatpush.xpose.msra.mxu0 0.0
    %675 = vmatpush.xpose.msra.mxu0 %v658
    %676 = vmatmul.f32.gmra.mxu0 %v656
    %v677 = vpop.f32.mrf.mxu0
    %v678 = vadd.f32 0.0, %v677
    %679 = vdwg.mxu0
    %680 = vrot.lane.b32.xlu0 %v79, 104
    %v681 = vpop.permute.xlu0 %680
    %682 = vrot.lane.b32.xlu0 %v79, 72
    %v683 = vpop.permute.xlu0 %682
    %v684 = vsel %vm89, %v681, 0
    %v686 = vsel %vm89, %v683, 0
    %688 = vmatpush.xpose.msra.mxu0 0.0
    %689 = vmatpush.xpose.msra.mxu0 0.0
    %690 = vmatpush.xpose.msra.mxu0 0.0
    %691 = vmatpush.xpose.msra.mxu0 0.0
    %692 = vmatpush.xpose.msra.mxu0 0.0
    %693 = vmatpush.xpose.msra.mxu0 0.0
    %694 = vmatpush.xpose.msra.mxu0 0.0
    %695 = vmatpush.xpose.msra.mxu0 0.0
    %696 = vmatpush.xpose.msra.mxu0 0.0
    %697 = vmatpush.xpose.msra.mxu0 0.0
    %698 = vmatpush.xpose.msra.mxu0 0.0
    %699 = vmatpush.xpose.msra.mxu0 0.0
    %700 = vmatpush.xpose.msra.mxu0 0.0
    %701 = vmatpush.xpose.msra.mxu0 0.0
    %702 = vmatpush.xpose.msra.mxu0 0.0
    %703 = vmatpush.xpose.msra.mxu0 %v686
    %704 = vmatmul.f32.gmra.mxu0 %v684
    %v705 = vpop.f32.mrf.mxu0
    %v706 = vadd.f32 0.0, %v705
    %707 = vdwg.mxu0
    %v708 = vmul.f32 %v678, 0.35355338
    %v709 = vmul.f32 %v706, 0.35355338
    %v710 = vsel %vm89, %v708, -inf
    %711 = vmax.xlane.f32.xlu0 %v710
    %v712 = vpop.xlane.xlu0 %711
    %v713 = vsel %vm89, %v709, -inf
    %714 = vmax.xlane.f32.xlu0 %v713
    %v715 = vpop.xlane.xlu0 %714
    %v716 = vsub.f32 %v708, %v712
    %v717 = vsub.f32 %v709, %v715
    %v718 = vmul.f32 %v716, 1.442695
    %v719 = vpow.pop %v718
    %v720 = vmul.f32 %v717, 1.442695
    %v721 = vpow.pop %v720
    %v722 = vsel %vm89, %v719, 0.0
    %723 = vadd.xlane.f32.xlu0 %v722
    %v724 = vpop.xlane.xlu0 %723
    %v725 = vsel %vm89, %v721, 0.0
    %726 = vadd.xlane.f32.xlu0 %v725
    %v727 = vpop.xlane.xlu0 %726
    %v728 = vrcp.pop %v724
    %v729 = vmul.f32 %v724, %v728
    %v730 = vsub.f32 1.0, %v729
    %v731 = vmul.f32 %v728, %v730
    %v732 = vadd.f32 %v728, %v731
    %vm733 = vweird.f32 %v724
    %vm734 = vweird.f32 %v728
    %vm735 = vmor %vm733, %vm734
    %v736 = vsel %vm735, %v728, %v732
    %v737 = vand.u32 2147483647, %v724
    %vm738 = vcmp.eq.f32.partialorder %v737, 8.507059e+37
    %v739 = vand.u32 %v724, 2147483648
    %v740 = vor.u32 1.1754944e-38, %v739
    %v741 = vsel %vm738, %v740, %v736
    %v742 = vmul.f32 %v719, %v741
    %v743 = vrcp.pop %v727
    %v744 = vmul.f32 %v727, %v743
    %v745 = vsub.f32 1.0, %v744
    %v746 = vmul.f32 %v743, %v745
    %v747 = vadd.f32 %v743, %v746
    %vm748 = vweird.f32 %v727
    %vm749 = vweird.f32 %v743
    %vm750 = vmor %vm748, %vm749
    %v751 = vsel %vm750, %v743, %v747
    %v752 = vand.u32 2147483647, %v727
    %vm753 = vcmp.eq.f32.partialorder %v752, 8.507059e+37
    %v754 = vand.u32 %v727, 2147483648
    %v755 = vor.u32 1.1754944e-38, %v754
    %v756 = vsel %vm753, %v755, %v751
    %v757 = vmul.f32 %v721, %v756
    %v758 = vadd.f32 %v567, %v742
    %v759 = vadd.f32 %v568, %v757
    %760 = vrot.lane.b32.xlu0 %v76, 40
    %v761 = vpop.permute.xlu0 %760
    %v764 = vsel %vm89, %v742, 0
    %766 = vmatpush.msra.mxu0 0.0
    %767 = vmatpush.msra.mxu0 0.0
    %768 = vmatpush.msra.mxu0 0.0
    %769 = vmatpush.msra.mxu0 0.0
    %770 = vmatpush.msra.mxu0 0.0
    %771 = vmatpush.msra.mxu0 0.0
    %772 = vmatpush.msra.mxu0 0.0
    %773 = vmatpush.msra.mxu0 0.0
    %774 = vmatpush.msra.mxu0 0.0
    %775 = vmatpush.msra.mxu0 0.0
    %776 = vmatpush.msra.mxu0 0.0
    %777 = vmatpush.msra.mxu0 0.0
    %778 = vmatpush.msra.mxu0 0.0
    %779 = vmatpush.msra.mxu0 0.0
    %780 = vmatpush.msra.mxu0 0.0
    %781 = vmatpush.msra.mxu0 %v761
    %782 = vmatmul.f32.gmra.mxu0 %v764
    %v783 = vpop.f32.mrf.mxu0
    %v784 = vadd.f32 0.0, %v783
    %785 = vdwg.mxu0
    %786 = vrot.lane.b32.xlu0 %v79, 40
    %v787 = vpop.permute.xlu0 %786
    %v790 = vsel %vm89, %v757, 0
    %792 = vmatpush.msra.mxu0 0.0
    %793 = vmatpush.msra.mxu0 0.0
    %794 = vmatpush.msra.mxu0 0.0
    %795 = vmatpush.msra.mxu0 0.0
    %796 = vmatpush.msra.mxu0 0.0
    %797 = vmatpush.msra.mxu0 0.0
    %798 = vmatpush.msra.mxu0 0.0
    %799 = vmatpush.msra.mxu0 0.0
    %800 = vmatpush.msra.mxu0 0.0
    %801 = vmatpush.msra.mxu0 0.0
    %802 = vmatpush.msra.mxu0 0.0
    %803 = vmatpush.msra.mxu0 0.0
    %804 = vmatpush.msra.mxu0 0.0
    %805 = vmatpush.msra.mxu0 0.0
    %806 = vmatpush.msra.mxu0 0.0
    %807 = vmatpush.msra.mxu0 %v787
    %808 = vmatmul.f32.gmra.mxu0 %v790
    %v809 = vpop.f32.mrf.mxu0
    %v810 = vadd.f32 0.0, %v809
    %811 = vdwg.mxu0
    %v813 = vsel %vm89, %v784, 0
    %v816 = vsel %vm89, %v810, 0
    %818 = vmatpush.msra.mxu0 0.0
    %819 = vmatpush.msra.mxu0 0.0
    %820 = vmatpush.msra.mxu0 0.0
    %821 = vmatpush.msra.mxu0 0.0
    %822 = vmatpush.msra.mxu0 0.0
    %823 = vmatpush.msra.mxu0 0.0
    %824 = vmatpush.msra.mxu0 0.0
    %825 = vmatpush.msra.mxu0 0.0
    %826 = vmatpush.msra.mxu0 0.0
    %827 = vmatpush.msra.mxu0 0.0
    %828 = vmatpush.msra.mxu0 0.0
    %829 = vmatpush.msra.mxu0 0.0
    %830 = vmatpush.msra.mxu0 0.0
    %831 = vmatpush.msra.mxu0 0.0
    %832 = vmatpush.msra.mxu0 0.0
    %833 = vmatpush.msra.mxu0 %v84
    %834 = vmatmul.f32.gmra.mxu0 %v813
    %v835 = vpop.f32.mrf.mxu0
    %v836 = vadd.f32 0.0, %v835
    %837 = vmatmul.f32.gmra.mxu0 %v816
    %v838 = vpop.f32.mrf.mxu0
    %v839 = vadd.f32 0.0, %v838
    %840 = vdwg.mxu0
    %v841 = vadd.f32 %v650, %v836
    %v842 = vadd.f32 %v651, %v839
    %v843 = vperm.slane %v85, 0
    %v844 = vadd.f32 %v841, %v843
    %v845 = vadd.f32 %v842, %v843
    %v846 = vmul.f32 %v758, 0.25
    %v847 = vmul.f32 %v759, 0.25
    %v848 = vadd.f32 %v35, %v844
    %v849 = vadd.f32 %v36, %v845
    %v850 = vld [vmem:[%s2 + $0x7] sm:$0x1]
    %v851 = vld [vmem:[%s2 + $0xa] sm:$0x1]
    %vm852 = vcmask 261120
    %v853 = vsel %vm852, %v848, 0.0
    %854 = vadd.xlane.f32.xlu0 %v853
    %v855 = vpop.xlane.xlu0 %854
    %v856 = vsel %vm852, %v849, 0.0
    %857 = vadd.xlane.f32.xlu0 %v856
    %v858 = vpop.xlane.xlu0 %857
    %v859 = vrcp.pop 32.0
    %v860 = vmul.f32 32.0, %v859
    %v861 = vsub.f32 1.0, %v860
    %v862 = vmul.f32 %v859, %v861
    %v863 = vadd.f32 %v859, %v862
    %vm864 = vweird.f32 %v859
    %v865 = vsel %vm864, %v859, %v863
    %v866 = vmul.f32 %v855, %v865
    %v867 = vmul.f32 %v858, %v865
    %v868 = vsub.f32 %v848, %v866
    %v869 = vsub.f32 %v849, %v867
    %v870 = vmul.f32 %v868, %v868
    %v871 = vmul.f32 %v869, %v869
    %v872 = vsel %vm852, %v870, 0.0
    %873 = vadd.xlane.f32.xlu0 %v872
    %v874 = vpop.xlane.xlu0 %873
    %v875 = vsel %vm852, %v871, 0.0
    %876 = vadd.xlane.f32.xlu0 %v875
    %v877 = vpop.xlane.xlu0 %876
    %v878 = vmul.f32 %v874, %v865
    %v879 = vmul.f32 %v877, %v865
    %v880 = vadd.f32 %v878, 1e-05
    %v881 = vadd.f32 %v879, 1e-05
    %v882 = vrsqrt.pop %v880
    %v883 = vmul.f32 %v882, %v880
    %v884 = vmul.f32 %v883, %v882
    %v885 = vmul.f32 0.5, %v884
    %v886 = vsub.f32 1.5, %v885
    %v887 = vmul.f32 %v882, %v886
    %vm888 = vweird.f32 %v880
    %vm889 = vweird.f32 %v882
    %vm890 = vmor %vm888, %vm889
    %v891 = vsel %vm890, %v882, %v887
    %v892 = vrsqrt.pop %v881
    %v893 = vmul.f32 %v892, %v881
    %v894 = vmul.f32 %v893, %v892
    %v895 = vmul.f32 0.5, %v894
    %v896 = vsub.f32 1.5, %v895
    %v897 = vmul.f32 %v892, %v896
    %vm898 = vweird.f32 %v881
    %vm899 = vweird.f32 %v892
    %vm900 = vmor %vm898, %vm899
    %v901 = vsel %vm900, %v892, %v897
    %v902 = vmul.f32 %v868, %v891
    %v903 = vmul.f32 %v869, %v901
    %v904 = vperm.slane %v850, 0
    %v905 = vmul.f32 %v902, %v904
    %v906 = vmul.f32 %v903, %v904
    %v907 = vperm.slane %v851, 0
    %v908 = vadd.f32 %v905, %v907
    %v909 = vadd.f32 %v906, %v907
    %v910 = vld [vmem:[#allocation2 + $0x60] sm:$0xff]
    %v911 = vld [vmem:[#allocation2 + $0x68] sm:$0xff]
    %v912 = vld [vmem:[#allocation2 + $0x70] sm:$0xff]
    %v913 = vld [vmem:[#allocation2 + $0x78] sm:$0xff]
    %v914 = vld [vmem:[#allocation2 + $0x80] sm:$0xff]
    %v915 = vld [vmem:[#allocation2 + $0x88] sm:$0xff]
    %v916 = vld [vmem:[#allocation2 + $0x90] sm:$0xff]
    %v917 = vld [vmem:[#allocation2 + $0x98] sm:$0xff]
    %918 = vrot.lane.b32.xlu0 %v35, 64
    %v919 = vpop.permute.xlu0 %918
    %920 = vrot.lane.b32.xlu0 %v36, 64
    %v921 = vpop.permute.xlu0 %920
    %v922 = vsel %vm852, %v919, 0
    %v924 = vsel %vm852, %v921, 0
    %926 = vmatpush.msra.mxu0 0.0
    %927 = vmatpush.msra.mxu0 0.0
    %928 = vmatpush.msra.mxu0 0.0
    %929 = vmatpush.msra.mxu0 0.0
    %930 = vmatpush.msra.mxu0 0.0
    %931 = vmatpush.msra.mxu0 0.0
    %932 = vmatpush.msra.mxu0 0.0
    %933 = vmatpush.msra.mxu0 0.0
    %934 = vmatpush.msra.mxu0 0.0
    %935 = vmatpush.msra.mxu0 0.0
    %936 = vmatpush.msra.mxu0 0.0
    %937 = vmatpush.msra.mxu0 0.0
    %938 = vmatpush.msra.mxu0 %v917
    %939 = vmatpush.msra.mxu0 %v916
    %940 = vmatpush.msra.mxu0 %v915
    %941 = vmatpush.msra.mxu0 %v914
    %942 = vmatmul.f32.gmra.mxu0 %v922
    %v943 = vpop.f32.mrf.mxu0
    %v944 = vadd.f32 0.0, %v943
    %945 = vmatmul.f32.gmra.mxu0 %v924
    %v946 = vpop.f32.mrf.mxu0
    %v947 = vadd.f32 0.0, %v946
    %948 = vdwg.mxu0
    %v950 = vsel %vm852, %v908, 0
    %v953 = vsel %vm852, %v909, 0
    %955 = vmatpush.msra.mxu0 0.0
    %956 = vmatpush.msra.mxu0 0.0
    %957 = vmatpush.msra.mxu0 0.0
    %958 = vmatpush.msra.mxu0 0.0
    %959 = vmatpush.msra.mxu0 0.0
    %960 = vmatpush.msra.mxu0 0.0
    %961 = vmatpush.msra.mxu0 0.0
    %962 = vmatpush.msra.mxu0 0.0
    %963 = vmatpush.msra.mxu0 0.0
    %964 = vmatpush.msra.mxu0 0.0
    %965 = vmatpush.msra.mxu0 0.0
    %966 = vmatpush.msra.mxu0 0.0
    %967 = vmatpush.msra.mxu0 %v913
    %968 = vmatpush.msra.mxu0 %v912
    %969 = vmatpush.msra.mxu0 %v911
    %970 = vmatpush.msra.mxu0 %v910
    %971 = vmatmul.f32.gmra.mxu0 %v950
    %v972 = vpop.f32.mrf.mxu0
    %v973 = vadd.f32 %v944, %v972
    %974 = vmatmul.f32.gmra.mxu0 %v953
    %v975 = vpop.f32.mrf.mxu0
    %v976 = vadd.f32 %v947, %v975
    %977 = vdwg.mxu0
    %v978 = vld [vmem:[%s2 + $0x2] sm:$0x1]
    %v979 = vperm.slane %v978, 0
    %v980 = vadd.f32 %v973, %v979
    %v981 = vadd.f32 %v976, %v979
    %v982 = vld [vmem:[#allocation2 + $0xa0] sm:$0xff]
    %v983 = vld [vmem:[#allocation2 + $0xa8] sm:$0xff]
    %v984 = vld [vmem:[#allocation2 + $0xb0] sm:$0xff]
    %v985 = vld [vmem:[#allocation2 + $0xb8] sm:$0xff]
    %v986 = vld [vmem:[#allocation2 + $0xc0] sm:$0xff]
    %v987 = vld [vmem:[#allocation2 + $0xc8] sm:$0xff]
    %v988 = vld [vmem:[#allocation2 + $0xd0] sm:$0xff]
    %v989 = vld [vmem:[#allocation2 + $0xd8] sm:$0xff]
    %v990 = vld [vmem:[%s2 + $0x3] sm:$0x1]
    %v991 = vperm.slane %v990, 0
    %v993 = vsel %vm51, %v37, 0
    %v996 = vsel %vm51, %v38, 0
    %v999 = vsel %vm51, %v39, 0
    %v1002 = vsel %vm51, %v40, 0
    %1004 = vmatpush.msra.mxu0 0.0
    %1005 = vmatpush.msra.mxu0 0.0
    %1006 = vmatpush.msra.mxu0 0.0
    %1007 = vmatpush.msra.mxu0 0.0
    %1008 = vmatpush.msra.mxu0 0.0
    %1009 = vmatpush.msra.mxu0 0.0
    %1010 = vmatpush.msra.mxu0 0.0
    %1011 = vmatpush.msra.mxu0 0.0
    %1012 = vmatpush.msra.mxu0 %v989
    %1013 = vmatpush.msra.mxu0 %v988
    %1014 = vmatpush.msra.mxu0 %v987
    %1015 = vmatpush.msra.mxu0 %v986
    %1016 = vmatpush.msra.mxu0 %v985
    %1017 = vmatpush.msra.mxu0 %v984
    %1018 = vmatpush.msra.mxu0 %v983
    %1019 = vmatpush.msra.mxu0 %v982
    %1020 = vmatmul.f32.gmra.mxu0 %v993
    %v1021 = vpop.f32.mrf.mxu0
    %v1022 = vadd.f32 %v991, %v1021
    %1023 = vmatmul.f32.gmra.mxu0 %v996
    %v1024 = vpop.f32.mrf.mxu0
    %v1025 = vadd.f32 %v991, %v1024
    %1026 = vmatmul.f32.gmra.mxu0 %v999
    %v1027 = vpop.f32.mrf.mxu0
    %v1028 = vadd.f32 %v991, %v1027
    %1029 = vmatmul.f32.gmra.mxu0 %v1002
    %v1030 = vpop.f32.mrf.mxu0
    %v1031 = vadd.f32 %v991, %v1030
    %1032 = vdwg.mxu0
    %v1033 = vld [vmem:[#allocation2 + $0xe0] sm:$0xff]
    %v1034 = vld [vmem:[#allocation2 + $0xe8] sm:$0xff]
    %v1035 = vld [vmem:[#allocation2 + $0xf0] sm:$0xff]
    %v1036 = vld [vmem:[#allocation2 + $0xf8] sm:$0xff]
    %v1037 = vld [vmem:[%s2 + $0x4] sm:$0x1]
    %v1039 = vsel %vm89, %v980, 0
    %v1042 = vsel %vm89, %v1022, 0
    %v1045 = vsel %vm89, %v1025, 0
    %1047 = vmatpush.xpose.msra.mxu0 0.0
    %1048 = vmatpush.xpose.msra.mxu0 0.0
    %1049 = vmatpush.xpose.msra.mxu0 0.0
    %1050 = vmatpush.xpose.msra.mxu0 0.0
    %1051 = vmatpush.xpose.msra.mxu0 0.0
    %1052 = vmatpush.xpose.msra.mxu0 0.0
    %1053 = vmatpush.xpose.msra.mxu0 0.0
    %1054 = vmatpush.xpose.msra.mxu0 0.0
    %1055 = vmatpush.xpose.msra.mxu0 0.0
    %1056 = vmatpush.xpose.msra.mxu0 0.0
    %1057 = vmatpush.xpose.msra.mxu0 0.0
    %1058 = vmatpush.xpose.msra.mxu0 0.0
    %1059 = vmatpush.xpose.msra.mxu0 0.0
    %1060 = vmatpush.xpose.msra.mxu0 0.0
    %1061 = vmatpush.xpose.msra.mxu0 %v1045
    %1062 = vmatpush.xpose.msra.mxu0 %v1042
    %1063 = vmatmul.f32.gmra.mxu0 %v1039
    %v1064 = vpop.f32.mrf.mxu0
    %v1065 = vadd.f32 0.0, %v1064
    %1066 = vdwg.mxu0
    %v1068 = vsel %vm89, %v981, 0
    %v1071 = vsel %vm89, %v1028, 0
    %v1074 = vsel %vm89, %v1031, 0
    %1076 = vmatpush.xpose.msra.mxu0 0.0
    %1077 = vmatpush.xpose.msra.mxu0 0.0
    %1078 = vmatpush.xpose.msra.mxu0 0.0
    %1079 = vmatpush.xpose.msra.mxu0 0.0
    %1080 = vmatpush.xpose.msra.mxu0 0.0
    %1081 = vmatpush.xpose.msra.mxu0 0.0
    %1082 = vmatpush.xpose.msra.mxu0 0.0
    %1083 = vmatpush.xpose.msra.mxu0 0.0
    %1084 = vmatpush.xpose.msra.mxu0 0.0
    %1085 = vmatpush.xpose.msra.mxu0 0.0
    %1086 = vmatpush.xpose.msra.mxu0 0.0
    %1087 = vmatpush.xpose.msra.mxu0 0.0
    %1088 = vmatpush.xpose.msra.mxu0 0.0
    %1089 = vmatpush.xpose.msra.mxu0 0.0
    %1090 = vmatpush.xpose.msra.mxu0 %v1074
    %1091 = vmatpush.xpose.msra.mxu0 %v1071
    %1092 = vmatmul.f32.gmra.mxu0 %v1068
    %v1093 = vpop.f32.mrf.mxu0
    %v1094 = vadd.f32 0.0, %v1093
    %1095 = vdwg.mxu0
    %v1096 = vmul.f32 %v1065, 0.35355338
    %v1097 = vmul.f32 %v1094, 0.35355338
    %vm1098 = vcmask 130048
    %v1099 = vsel %vm1098, %v1096, -inf
    %1100 = vmax.xlane.f32.xlu0 %v1099
    %v1101 = vpop.xlane.xlu0 %1100
    %v1102 = vsel %vm1098, %v1097, -inf
    %1103 = vmax.xlane.f32.xlu0 %v1102
    %v1104 = vpop.xlane.xlu0 %1103
    %v1105 = vsub.f32 %v1096, %v1101
    %v1106 = vsub.f32 %v1097, %v1104
    %v1107 = vmul.f32 %v1105, 1.442695
    %v1108 = vpow.pop %v1107
    %v1109 = vmul.f32 %v1106, 1.442695
    %v1110 = vpow.pop %v1109
    %v1111 = vsel %vm1098, %v1108, 0.0
    %1112 = vadd.xlane.f32.xlu0 %v1111
    %v1113 = vpop.xlane.xlu0 %1112
    %v1114 = vsel %vm1098, %v1110, 0.0
    %1115 = vadd.xlane.f32.xlu0 %v1114
    %v1116 = vpop.xlane.xlu0 %1115
    %v1117 = vrcp.pop %v1113
    %v1118 = vmul.f32 %v1113, %v1117
    %v1119 = vsub.f32 1.0, %v1118
    %v1120 = vmul.f32 %v1117, %v1119
    %v1121 = vadd.f32 %v1117, %v1120
    %vm1122 = vweird.f32 %v1113
    %vm1123 = vweird.f32 %v1117
    %vm1124 = vmor %vm1122, %vm1123
    %v1125 = vsel %vm1124, %v1117, %v1121
    %v1126 = vand.u32 2147483647, %v1113
    %vm1127 = vcmp.eq.f32.partialorder %v1126, 8.507059e+37
    %v1128 = vand.u32 %v1113, 2147483648
    %v1129 = vor.u32 1.1754944e-38, %v1128
    %v1130 = vsel %vm1127, %v1129, %v1125
    %v1131 = vmul.f32 %v1108, %v1130
    %v1132 = vrcp.pop %v1116
    %v1133 = vmul.f32 %v1116, %v1132
    %v1134 = vsub.f32 1.0, %v1133
    %v1135 = vmul.f32 %v1132, %v1134
    %v1136 = vadd.f32 %v1132, %v1135
    %vm1137 = vweird.f32 %v1116
    %vm1138 = vweird.f32 %v1132
    %vm1139 = vmor %vm1137, %vm1138
    %v1140 = vsel %vm1139, %v1132, %v1136
    %v1141 = vand.u32 2147483647, %v1116
    %vm1142 = vcmp.eq.f32.partialorder %v1141, 8.507059e+37
    %v1143 = vand.u32 %v1116, 2147483648
    %v1144 = vor.u32 1.1754944e-38, %v1143
    %v1145 = vsel %vm1142, %v1144, %v1140
    %v1146 = vmul.f32 %v1110, %v1145
    %1147 = vrot.lane.b32.xlu0 %v1022, 96
    %v1148 = vpop.permute.xlu0 %1147
    %1149 = vrot.lane.b32.xlu0 %v1025, 96
    %v1150 = vpop.permute.xlu0 %1149
    %v1154 = vsel %vm1098, %v1131, 0
    %1156 = vmatpush.msra.mxu0 0.0
    %1157 = vmatpush.msra.mxu0 0.0
    %1158 = vmatpush.msra.mxu0 0.0
    %1159 = vmatpush.msra.mxu0 0.0
    %1160 = vmatpush.msra.mxu0 0.0
    %1161 = vmatpush.msra.mxu0 0.0
    %1162 = vmatpush.msra.mxu0 0.0
    %1163 = vmatpush.msra.mxu0 0.0
    %1164 = vmatpush.msra.mxu0 0.0
    %1165 = vmatpush.msra.mxu0 0.0
    %1166 = vmatpush.msra.mxu0 0.0
    %1167 = vmatpush.msra.mxu0 0.0
    %1168 = vmatpush.msra.mxu0 0.0
    %1169 = vmatpush.msra.mxu0 0.0
    %1170 = vmatpush.msra.mxu0 %v1150
    %1171 = vmatpush.msra.mxu0 %v1148
    %1172 = vmatmul.f32.gmra.mxu0 %v1154
    %v1173 = vpop.f32.mrf.mxu0
    %v1174 = vadd.f32 0.0, %v1173
    %1175 = vdwg.mxu0
    %1176 = vrot.lane.b32.xlu0 %v1028, 96
    %v1177 = vpop.permute.xlu0 %1176
    %1178 = vrot.lane.b32.xlu0 %v1031, 96
    %v1179 = vpop.permute.xlu0 %1178
    %v1183 = vsel %vm1098, %v1146, 0
    %1185 = vmatpush.msra.mxu0 0.0
    %1186 = vmatpush.msra.mxu0 0.0
    %1187 = vmatpush.msra.mxu0 0.0
    %1188 = vmatpush.msra.mxu0 0.0
    %1189 = vmatpush.msra.mxu0 0.0
    %1190 = vmatpush.msra.mxu0 0.0
    %1191 = vmatpush.msra.mxu0 0.0
    %1192 = vmatpush.msra.mxu0 0.0
    %1193 = vmatpush.msra.mxu0 0.0
    %1194 = vmatpush.msra.mxu0 0.0
    %1195 = vmatpush.msra.mxu0 0.0
    %1196 = vmatpush.msra.mxu0 0.0
    %1197 = vmatpush.msra.mxu0 0.0
    %1198 = vmatpush.msra.mxu0 0.0
    %1199 = vmatpush.msra.mxu0 %v1179
    %1200 = vmatpush.msra.mxu0 %v1177
    %1201 = vmatmul.f32.gmra.mxu0 %v1183
    %v1202 = vpop.f32.mrf.mxu0
    %v1203 = vadd.f32 0.0, %v1202
    %1204 = vdwg.mxu0
    %1205 = vrot.lane.b32.xlu0 %v980, 120
    %v1206 = vpop.permute.xlu0 %1205
    %1207 = vrot.lane.b32.xlu0 %v1022, 120
    %v1208 = vpop.permute.xlu0 %1207
    %1209 = vrot.lane.b32.xlu0 %v1025, 120
    %v1210 = vpop.permute.xlu0 %1209
    %v1211 = vsel %vm89, %v1206, 0
    %v1213 = vsel %vm89, %v1208, 0
    %v1215 = vsel %vm89, %v1210, 0
    %1217 = vmatpush.xpose.msra.mxu0 0.0
    %1218 = vmatpush.xpose.msra.mxu0 0.0
    %1219 = vmatpush.xpose.msra.mxu0 0.0
    %1220 = vmatpush.xpose.msra.mxu0 0.0
    %1221 = vmatpush.xpose.msra.mxu0 0.0
    %1222 = vmatpush.xpose.msra.mxu0 0.0
    %1223 = vmatpush.xpose.msra.mxu0 0.0
    %1224 = vmatpush.xpose.msra.mxu0 0.0
    %1225 = vmatpush.xpose.msra.mxu0 0.0
    %1226 = vmatpush.xpose.msra.mxu0 0.0
    %1227 = vmatpush.xpose.msra.mxu0 0.0
    %1228 = vmatpush.xpose.msra.mxu0 0.0
    %1229 = vmatpush.xpose.msra.mxu0 0.0
    %1230 = vmatpush.xpose.msra.mxu0 0.0
    %1231 = vmatpush.xpose.msra.mxu0 %v1215
    %1232 = vmatpush.xpose.msra.mxu0 %v1213
    %1233 = vmatmul.f32.gmra.mxu0 %v1211
    %v1234 = vpop.f32.mrf.mxu0
    %v1235 = vadd.f32 0.0, %v1234
    %1236 = vdwg.mxu0
    %1237 = vrot.lane.b32.xlu0 %v981, 120
    %v1238 = vpop.permute.xlu0 %1237
    %1239 = vrot.lane.b32.xlu0 %v1028, 120
    %v1240 = vpop.permute.xlu0 %1239
    %1241 = vrot.lane.b32.xlu0 %v1031, 120
    %v1242 = vpop.permute.xlu0 %1241
    %v1243 = vsel %vm89, %v1238, 0
    %v1245 = vsel %vm89, %v1240, 0
    %v1247 = vsel %vm89, %v1242, 0
    %1249 = vmatpush.xpose.msra.mxu0 0.0
    %1250 = vmatpush.xpose.msra.mxu0 0.0
    %1251 = vmatpush.xpose.msra.mxu0 0.0
    %1252 = vmatpush.xpose.msra.mxu0 0.0
    %1253 = vmatpush.xpose.msra.mxu0 0.0
    %1254 = vmatpush.xpose.msra.mxu0 0.0
    %1255 = vmatpush.xpose.msra.mxu0 0.0
    %1256 = vmatpush.xpose.msra.mxu0 0.0
    %1257 = vmatpush.xpose.msra.mxu0 0.0
    %1258 = vmatpush.xpose.msra.mxu0 0.0
    %1259 = vmatpush.xpose.msra.mxu0 0.0
    %1260 = vmatpush.xpose.msra.mxu0 0.0
    %1261 = vmatpush.xpose.msra.mxu0 0.0
    %1262 = vmatpush.xpose.msra.mxu0 0.0
    %1263 = vmatpush.xpose.msra.mxu0 %v1247
    %1264 = vmatpush.xpose.msra.mxu0 %v1245
    %1265 = vmatmul.f32.gmra.mxu0 %v1243
    %v1266 = vpop.f32.mrf.mxu0
    %v1267 = vadd.f32 0.0, %v1266
    %1268 = vdwg.mxu0
    %v1269 = vmul.f32 %v1235, 0.35355338
    %v1270 = vmul.f32 %v1267, 0.35355338
    %v1271 = vsel %vm1098, %v1269, -inf
    %1272 = vmax.xlane.f32.xlu0 %v1271
    %v1273 = vpop.xlane.xlu0 %1272
    %v1274 = vsel %vm1098, %v1270, -inf
    %1275 = vmax.xlane.f32.xlu0 %v1274
    %v1276 = vpop.xlane.xlu0 %1275
    %v1277 = vsub.f32 %v1269, %v1273
    %v1278 = vsub.f32 %v1270, %v1276
    %v1279 = vmul.f32 %v1277, 1.442695
    %v1280 = vpow.pop %v1279
    %v1281 = vmul.f32 %v1278, 1.442695
    %v1282 = vpow.pop %v1281
    %v1283 = vsel %vm1098, %v1280, 0.0
    %1284 = vadd.xlane.f32.xlu0 %v1283
    %v1285 = vpop.xlane.xlu0 %1284
    %v1286 = vsel %vm1098, %v1282, 0.0
    %1287 = vadd.xlane.f32.xlu0 %v1286
    %v1288 = vpop.xlane.xlu0 %1287
    %v1289 = vrcp.pop %v1285
    %v1290 = vmul.f32 %v1285, %v1289
    %v1291 = vsub.f32 1.0, %v1290
    %v1292 = vmul.f32 %v1289, %v1291
    %v1293 = vadd.f32 %v1289, %v1292
    %vm1294 = vweird.f32 %v1285
    %vm1295 = vweird.f32 %v1289
    %vm1296 = vmor %vm1294, %vm1295
    %v1297 = vsel %vm1296, %v1289, %v1293
    %v1298 = vand.u32 2147483647, %v1285
    %vm1299 = vcmp.eq.f32.partialorder %v1298, 8.507059e+37
    %v1300 = vand.u32 %v1285, 2147483648
    %v1301 = vor.u32 1.1754944e-38, %v1300
    %v1302 = vsel %vm1299, %v1301, %v1297
    %v1303 = vmul.f32 %v1280, %v1302
    %v1304 = vrcp.pop %v1288
    %v1305 = vmul.f32 %v1288, %v1304
    %v1306 = vsub.f32 1.0, %v1305
    %v1307 = vmul.f32 %v1304, %v1306
    %v1308 = vadd.f32 %v1304, %v1307
    %vm1309 = vweird.f32 %v1288
    %vm1310 = vweird.f32 %v1304
    %vm1311 = vmor %vm1309, %vm1310
    %v1312 = vsel %vm1311, %v1304, %v1308
    %v1313 = vand.u32 2147483647, %v1288
    %vm1314 = vcmp.eq.f32.partialorder %v1313, 8.507059e+37
    %v1315 = vand.u32 %v1288, 2147483648
    %v1316 = vor.u32 1.1754944e-38, %v1315
    %v1317 = vsel %vm1314, %v1316, %v1312
    %v1318 = vmul.f32 %v1282, %v1317
    %v1319 = vadd.f32 %v1131, %v1303
    %v1320 = vadd.f32 %v1146, %v1318
    %1321 = vrot.lane.b32.xlu0 %v1022, 88
    %v1322 = vpop.permute.xlu0 %1321
    %1323 = vrot.lane.b32.xlu0 %v1025, 88
    %v1324 = vpop.permute.xlu0 %1323
    %v1328 = vsel %vm1098, %v1303, 0
    %1330 = vmatpush.msra.mxu0 0.0
    %1331 = vmatpush.msra.mxu0 0.0
    %1332 = vmatpush.msra.mxu0 0.0
    %1333 = vmatpush.msra.mxu0 0.0
    %1334 = vmatpush.msra.mxu0 0.0
    %1335 = vmatpush.msra.mxu0 0.0
    %1336 = vmatpush.msra.mxu0 0.0
    %1337 = vmatpush.msra.mxu0 0.0
    %1338 = vmatpush.msra.mxu0 0.0
    %1339 = vmatpush.msra.mxu0 0.0
    %1340 = vmatpush.msra.mxu0 0.0
    %1341 = vmatpush.msra.mxu0 0.0
    %1342 = vmatpush.msra.mxu0 0.0
    %1343 = vmatpush.msra.mxu0 0.0
    %1344 = vmatpush.msra.mxu0 %v1324
    %1345 = vmatpush.msra.mxu0 %v1322
    %1346 = vmatmul.f32.gmra.mxu0 %v1328
    %v1347 = vpop.f32.mrf.mxu0
    %v1348 = vadd.f32 0.0, %v1347
    %1349 = vdwg.mxu0
    %1350 = vrot.lane.b32.xlu0 %v1028, 88
    %v1351 = vpop.permute.xlu0 %1350
    %1352 = vrot.lane.b32.xlu0 %v1031, 88
    %v1353 = vpop.permute.xlu0 %1352
    %v1357 = vsel %vm1098, %v1318, 0
    %1359 = vmatpush.msra.mxu0 0.0
    %1360 = vmatpush.msra.mxu0 0.0
    %1361 = vmatpush.msra.mxu0 0.0
    %1362 = vmatpush.msra.mxu0 0.0
    %1363 = vmatpush.msra.mxu0 0.0
    %1364 = vmatpush.msra.mxu0 0.0
    %1365 = vmatpush.msra.mxu0 0.0
    %1366 = vmatpush.msra.mxu0 0.0
    %1367 = vmatpush.msra.mxu0 0.0
    %1368 = vmatpush.msra.mxu0 0.0
    %1369 = vmatpush.msra.mxu0 0.0
    %1370 = vmatpush.msra.mxu0 0.0
    %1371 = vmatpush.msra.mxu0 0.0
    %1372 = vmatpush.msra.mxu0 0.0
    %1373 = vmatpush.msra.mxu0 %v1353
    %1374 = vmatpush.msra.mxu0 %v1351
    %1375 = vmatmul.f32.gmra.mxu0 %v1357
    %v1376 = vpop.f32.mrf.mxu0
    %v1377 = vadd.f32 0.0, %v1376
    %1378 = vdwg.mxu0
    %v1380 = vsel %vm89, %v1348, 0
    %v1383 = vsel %vm89, %v1377, 0
    %1385 = vmatpush.msra.mxu0 0.0
    %1386 = vmatpush.msra.mxu0 0.0
    %1387 = vmatpush.msra.mxu0 0.0
    %1388 = vmatpush.msra.mxu0 0.0
    %1389 = vmatpush.msra.mxu0 0.0
    %1390 = vmatpush.msra.mxu0 0.0
    %1391 = vmatpush.msra.mxu0 0.0
    %1392 = vmatpush.msra.mxu0 0.0
    %1393 = vmatpush.msra.mxu0 0.0
    %1394 = vmatpush.msra.mxu0 0.0
    %1395 = vmatpush.msra.mxu0 0.0
    %1396 = vmatpush.msra.mxu0 0.0
    %1397 = vmatpush.msra.mxu0 0.0
    %1398 = vmatpush.msra.mxu0 0.0
    %1399 = vmatpush.msra.mxu0 0.0
    %1400 = vmatpush.msra.mxu0 %v1034
    %1401 = vmatmul.f32.gmra.mxu0 %v1380
    %v1402 = vpop.f32.mrf.mxu0
    %v1403 = vadd.f32 0.0, %v1402
    %1404 = vmatmul.f32.gmra.mxu0 %v1383
    %v1405 = vpop.f32.mrf.mxu0
    %v1406 = vadd.f32 0.0, %v1405
    %1407 = vdwg.mxu0
    %v1409 = vsel %vm89, %v1174, 0
    %v1412 = vsel %vm89, %v1203, 0
    %1414 = vmatpush.msra.mxu0 0.0
    %1415 = vmatpush.msra.mxu0 0.0
    %1416 = vmatpush.msra.mxu0 0.0
    %1417 = vmatpush.msra.mxu0 0.0
    %1418 = vmatpush.msra.mxu0 0.0
    %1419 = vmatpush.msra.mxu0 0.0
    %1420 = vmatpush.msra.mxu0 0.0
    %1421 = vmatpush.msra.mxu0 0.0
    %1422 = vmatpush.msra.mxu0 0.0
    %1423 = vmatpush.msra.mxu0 0.0
    %1424 = vmatpush.msra.mxu0 0.0
    %1425 = vmatpush.msra.mxu0 0.0
    %1426 = vmatpush.msra.mxu0 0.0
    %1427 = vmatpush.msra.mxu0 0.0
    %1428 = vmatpush.msra.mxu0 0.0
    %1429 = vmatpush.msra.mxu0 %v1033
    %1430 = vmatmul.f32.gmra.mxu0 %v1409
    %v1431 = vpop.f32.mrf.mxu0
    %v1432 = vadd.f32 %v1403, %v1431
    %1433 = vmatmul.f32.gmra.mxu0 %v1412
    %v1434 = vpop.f32.mrf.mxu0
    %v1435 = vadd.f32 %v1406, %v1434
    %1436 = vdwg.mxu0
    %1437 = vrot.lane.b32.xlu0 %v980, 112
    %v1438 = vpop.permute.xlu0 %1437
    %1439 = vrot.lane.b32.xlu0 %v1022, 112
    %v1440 = vpop.permute.xlu0 %1439
    %1441 = vrot.lane.b32.xlu0 %v1025, 112
    %v1442 = vpop.permute.xlu0 %1441
    %v1443 = vsel %vm89, %v1438, 0
    %v1445 = vsel %vm89, %v1440, 0
    %v1447 = vsel %vm89, %v1442, 0
    %1449 = vmatpush.xpose.msra.mxu0 0.0
    %1450 = vmatpush.xpose.msra.mxu0 0.0
    %1451 = vmatpush.xpose.msra.mxu0 0.0
    %1452 = vmatpush.xpose.msra.mxu0 0.0
    %1453 = vmatpush.xpose.msra.mxu0 0.0
    %1454 = vmatpush.xpose.msra.mxu0 0.0
    %1455 = vmatpush.xpose.msra.mxu0 0.0
    %1456 = vmatpush.xpose.msra.mxu0 0.0
    %1457 = vmatpush.xpose.msra.mxu0 0.0
    %1458 = vmatpush.xpose.msra.mxu0 0.0
    %1459 = vmatpush.xpose.msra.mxu0 0.0
    %1460 = vmatpush.xpose.msra.mxu0 0.0
    %1461 = vmatpush.xpose.msra.mxu0 0.0
    %1462 = vmatpush.xpose.msra.mxu0 0.0
    %1463 = vmatpush.xpose.msra.mxu0 %v1447
    %1464 = vmatpush.xpose.msra.mxu0 %v1445
    %1465 = vmatmul.f32.gmra.mxu0 %v1443
    %v1466 = vpop.f32.mrf.mxu0
    %v1467 = vadd.f32 0.0, %v1466
    %1468 = vdwg.mxu0
    %1469 = vrot.lane.b32.xlu0 %v981, 112
    %v1470 = vpop.permute.xlu0 %1469
    %1471 = vrot.lane.b32.xlu0 %v1028, 112
    %v1472 = vpop.permute.xlu0 %1471
    %1473 = vrot.lane.b32.xlu0 %v1031, 112
    %v1474 = vpop.permute.xlu0 %1473
    %v1475 = vsel %vm89, %v1470, 0
    %v1477 = vsel %vm89, %v1472, 0
    %v1479 = vsel %vm89, %v1474, 0
    %1481 = vmatpush.xpose.msra.mxu0 0.0
    %1482 = vmatpush.xpose.msra.mxu0 0.0
    %1483 = vmatpush.xpose.msra.mxu0 0.0
    %1484 = vmatpush.xpose.msra.mxu0 0.0
    %1485 = vmatpush.xpose.msra.mxu0 0.0
    %1486 = vmatpush.xpose.msra.mxu0 0.0
    %1487 = vmatpush.xpose.msra.mxu0 0.0
    %1488 = vmatpush.xpose.msra.mxu0 0.0
    %1489 = vmatpush.xpose.msra.mxu0 0.0
    %1490 = vmatpush.xpose.msra.mxu0 0.0
    %1491 = vmatpush.xpose.msra.mxu0 0.0
    %1492 = vmatpush.xpose.msra.mxu0 0.0
    %1493 = vmatpush.xpose.msra.mxu0 0.0
    %1494 = vmatpush.xpose.msra.mxu0 0.0
    %1495 = vmatpush.xpose.msra.mxu0 %v1479
    %1496 = vmatpush.xpose.msra.mxu0 %v1477
    %1497 = vmatmul.f32.gmra.mxu0 %v1475
    %v1498 = vpop.f32.mrf.mxu0
    %v1499 = vadd.f32 0.0, %v1498
    %1500 = vdwg.mxu0
    %v1501 = vmul.f32 %v1467, 0.35355338
    %v1502 = vmul.f32 %v1499, 0.35355338
    %v1503 = vsel %vm1098, %v1501, -inf
    %1504 = vmax.xlane.f32.xlu0 %v1503
    %v1505 = vpop.xlane.xlu0 %1504
    %v1506 = vsel %vm1098, %v1502, -inf
    %1507 = vmax.xlane.f32.xlu0 %v1506
    %v1508 = vpop.xlane.xlu0 %1507
    %v1509 = vsub.f32 %v1501, %v1505
    %v1510 = vsub.f32 %v1502, %v1508
    %v1511 = vmul.f32 %v1509, 1.442695
    %v1512 = vpow.pop %v1511
    %v1513 = vmul.f32 %v1510, 1.442695
    %v1514 = vpow.pop %v1513
    %v1515 = vsel %vm1098, %v1512, 0.0
    %1516 = vadd.xlane.f32.xlu0 %v1515
    %v1517 = vpop.xlane.xlu0 %1516
    %v1518 = vsel %vm1098, %v1514, 0.0
    %1519 = vadd.xlane.f32.xlu0 %v1518
    %v1520 = vpop.xlane.xlu0 %1519
    %v1521 = vrcp.pop %v1517
    %v1522 = vmul.f32 %v1517, %v1521
    %v1523 = vsub.f32 1.0, %v1522
    %v1524 = vmul.f32 %v1521, %v1523
    %v1525 = vadd.f32 %v1521, %v1524
    %vm1526 = vweird.f32 %v1517
    %vm1527 = vweird.f32 %v1521
    %vm1528 = vmor %vm1526, %vm1527
    %v1529 = vsel %vm1528, %v1521, %v1525
    %v1530 = vand.u32 2147483647, %v1517
    %vm1531 = vcmp.eq.f32.partialorder %v1530, 8.507059e+37
    %v1532 = vand.u32 %v1517, 2147483648
    %v1533 = vor.u32 1.1754944e-38, %v1532
    %v1534 = vsel %vm1531, %v1533, %v1529
    %v1535 = vmul.f32 %v1512, %v1534
    %v1536 = vrcp.pop %v1520
    %v1537 = vmul.f32 %v1520, %v1536
    %v1538 = vsub.f32 1.0, %v1537
    %v1539 = vmul.f32 %v1536, %v1538
    %v1540 = vadd.f32 %v1536, %v1539
    %vm1541 = vweird.f32 %v1520
    %vm1542 = vweird.f32 %v1536
    %vm1543 = vmor %vm1541, %vm1542
    %v1544 = vsel %vm1543, %v1536, %v1540
    %v1545 = vand.u32 2147483647, %v1520
    %vm1546 = vcmp.eq.f32.partialorder %v1545, 8.507059e+37
    %v1547 = vand.u32 %v1520, 2147483648
    %v1548 = vor.u32 1.1754944e-38, %v1547
    %v1549 = vsel %vm1546, %v1548, %v1544
    %v1550 = vmul.f32 %v1514, %v1549
    %v1551 = vadd.f32 %v1319, %v1535
    %v1552 = vadd.f32 %v1320, %v1550
    %1553 = vrot.lane.b32.xlu0 %v1022, 80
    %v1554 = vpop.permute.xlu0 %1553
    %1555 = vrot.lane.b32.xlu0 %v1025, 80
    %v1556 = vpop.permute.xlu0 %1555
    %v1560 = vsel %vm1098, %v1535, 0
    %1562 = vmatpush.msra.mxu0 0.0
    %1563 = vmatpush.msra.mxu0 0.0
    %1564 = vmatpush.msra.mxu0 0.0
    %1565 = vmatpush.msra.mxu0 0.0
    %1566 = vmatpush.msra.mxu0 0.0
    %1567 = vmatpush.msra.mxu0 0.0
    %1568 = vmatpush.msra.mxu0 0.0
    %1569 = vmatpush.msra.mxu0 0.0
    %1570 = vmatpush.msra.mxu0 0.0
    %1571 = vmatpush.msra.mxu0 0.0
    %1572 = vmatpush.msra.mxu0 0.0
    %1573 = vmatpush.msra.mxu0 0.0
    %1574 = vmatpush.msra.mxu0 0.0
    %1575 = vmatpush.msra.mxu0 0.0
    %1576 = vmatpush.msra.mxu0 %v1556
    %1577 = vmatpush.msra.mxu0 %v1554
    %1578 = vmatmul.f32.gmra.mxu0 %v1560
    %v1579 = vpop.f32.mrf.mxu0
    %v1580 = vadd.f32 0.0, %v1579
    %1581 = vdwg.mxu0
    %1582 = vrot.lane.b32.xlu0 %v1028, 80
    %v1583 = vpop.permute.xlu0 %1582
    %1584 = vrot.lane.b32.xlu0 %v1031, 80
    %v1585 = vpop.permute.xlu0 %1584
    %v1589 = vsel %vm1098, %v1550, 0
    %1591 = vmatpush.msra.mxu0 0.0
    %1592 = vmatpush.msra.mxu0 0.0
    %1593 = vmatpush.msra.mxu0 0.0
    %1594 = vmatpush.msra.mxu0 0.0
    %1595 = vmatpush.msra.mxu0 0.0
    %1596 = vmatpush.msra.mxu0 0.0
    %1597 = vmatpush.msra.mxu0 0.0
    %1598 = vmatpush.msra.mxu0 0.0
    %1599 = vmatpush.msra.mxu0 0.0
    %1600 = vmatpush.msra.mxu0 0.0
    %1601 = vmatpush.msra.mxu0 0.0
    %1602 = vmatpush.msra.mxu0 0.0
    %1603 = vmatpush.msra.mxu0 0.0
    %1604 = vmatpush.msra.mxu0 0.0
    %1605 = vmatpush.msra.mxu0 %v1585
    %1606 = vmatpush.msra.mxu0 %v1583
    %1607 = vmatmul.f32.gmra.mxu0 %v1589
    %v1608 = vpop.f32.mrf.mxu0
    %v1609 = vadd.f32 0.0, %v1608
    %1610 = vdwg.mxu0
    %v1612 = vsel %vm89, %v1580, 0
    %v1615 = vsel %vm89, %v1609, 0
    %1617 = vmatpush.msra.mxu0 0.0
    %1618 = vmatpush.msra.mxu0 0.0
    %1619 = vmatpush.msra.mxu0 0.0
    %1620 = vmatpush.msra.mxu0 0.0
    %1621 = vmatpush.msra.mxu0 0.0
    %1622 = vmatpush.msra.mxu0 0.0
    %1623 = vmatpush.msra.mxu0 0.0
    %1624 = vmatpush.msra.mxu0 0.0
    %1625 = vmatpush.msra.mxu0 0.0
    %1626 = vmatpush.msra.mxu0 0.0
    %1627 = vmatpush.msra.mxu0 0.0
    %1628 = vmatpush.msra.mxu0 0.0
    %1629 = vmatpush.msra.mxu0 0.0
    %1630 = vmatpush.msra.mxu0 0.0
    %1631 = vmatpush.msra.mxu0 0.0
    %1632 = vmatpush.msra.mxu0 %v1035
    %1633 = vmatmul.f32.gmra.mxu0 %v1612
    %v1634 = vpop.f32.mrf.mxu0
    %v1635 = vadd.f32 0.0, %v1634
    %1636 = vmatmul.f32.gmra.mxu0 %v1615
    %v1637 = vpop.f32.mrf.mxu0
    %v1638 = vadd.f32 0.0, %v1637
    %1639 = vdwg.mxu0
    %v1640 = vadd.f32 %v1432, %v1635
    %v1641 = vadd.f32 %v1435, %v1638
    %1642 = vrot.lane.b32.xlu0 %v980, 104
    %v1643 = vpop.permute.xlu0 %1642
    %1644 = vrot.lane.b32.xlu0 %v1022, 104
    %v1645 = vpop.permute.xlu0 %1644
    %1646 = vrot.lane.b32.xlu0 %v1025, 104
    %v1647 = vpop.permute.xlu0 %1646
    %v1648 = vsel %vm89, %v1643, 0
    %v1650 = vsel %vm89, %v1645, 0
    %v1652 = vsel %vm89, %v1647, 0
    %1654 = vmatpush.xpose.msra.mxu0 0.0
    %1655 = vmatpush.xpose.msra.mxu0 0.0
    %1656 = vmatpush.xpose.msra.mxu0 0.0
    %1657 = vmatpush.xpose.msra.mxu0 0.0
    %1658 = vmatpush.xpose.msra.mxu0 0.0
    %1659 = vmatpush.xpose.msra.mxu0 0.0
    %1660 = vmatpush.xpose.msra.mxu0 0.0
    %1661 = vmatpush.xpose.msra.mxu0 0.0
    %1662 = vmatpush.xpose.msra.mxu0 0.0
    %1663 = vmatpush.xpose.msra.mxu0 0.0
    %1664 = vmatpush.xpose.msra.mxu0 0.0
    %1665 = vmatpush.xpose.msra.mxu0 0.0
    %1666 = vmatpush.xpose.msra.mxu0 0.0
    %1667 = vmatpush.xpose.msra.mxu0 0.0
    %1668 = vmatpush.xpose.msra.mxu0 %v1652
    %1669 = vmatpush.xpose.msra.mxu0 %v1650
    %1670 = vmatmul.f32.gmra.mxu0 %v1648
    %v1671 = vpop.f32.mrf.mxu0
    %v1672 = vadd.f32 0.0, %v1671
    %1673 = vdwg.mxu0
    %1674 = vrot.lane.b32.xlu0 %v981, 104
    %v1675 = vpop.permute.xlu0 %1674
    %1676 = vrot.lane.b32.xlu0 %v1028, 104
    %v1677 = vpop.permute.xlu0 %1676
    %1678 = vrot.lane.b32.xlu0 %v1031, 104
    %v1679 = vpop.permute.xlu0 %1678
    %v1680 = vsel %vm89, %v1675, 0
    %v1682 = vsel %vm89, %v1677, 0
    %v1684 = vsel %vm89, %v1679, 0
    %1686 = vmatpush.xpose.msra.mxu0 0.0
    %1687 = vmatpush.xpose.msra.mxu0 0.0
    %1688 = vmatpush.xpose.msra.mxu0 0.0
    %1689 = vmatpush.xpose.msra.mxu0 0.0
    %1690 = vmatpush.xpose.msra.mxu0 0.0
    %1691 = vmatpush.xpose.msra.mxu0 0.0
    %1692 = vmatpush.xpose.msra.mxu0 0.0
    %1693 = vmatpush.xpose.msra.mxu0 0.0
    %1694 = vmatpush.xpose.msra.mxu0 0.0
    %1695 = vmatpush.xpose.msra.mxu0 0.0
    %1696 = vmatpush.xpose.msra.mxu0 0.0
    %1697 = vmatpush.xpose.msra.mxu0 0.0
    %1698 = vmatpush.xpose.msra.mxu0 0.0
    %1699 = vmatpush.xpose.msra.mxu0 0.0
    %1700 = vmatpush.xpose.msra.mxu0 %v1684
    %1701 = vmatpush.xpose.msra.mxu0 %v1682
    %1702 = vmatmul.f32.gmra.mxu0 %v1680
    %v1703 = vpop.f32.mrf.mxu0
    %v1704 = vadd.f32 0.0, %v1703
    %1705 = vdwg.mxu0
    %v1706 = vmul.f32 %v1672, 0.35355338
    %v1707 = vmul.f32 %v1704, 0.35355338
    %v1708 = vsel %vm1098, %v1706, -inf
    %1709 = vmax.xlane.f32.xlu0 %v1708
    %v1710 = vpop.xlane.xlu0 %1709
    %v1711 = vsel %vm1098, %v1707, -inf
    %1712 = vmax.xlane.f32.xlu0 %v1711
    %v1713 = vpop.xlane.xlu0 %1712
    %v1714 = vsub.f32 %v1706, %v1710
    %v1715 = vsub.f32 %v1707, %v1713
    %v1716 = vmul.f32 %v1714, 1.442695
    %v1717 = vpow.pop %v1716
    %v1718 = vmul.f32 %v1715, 1.442695
    %v1719 = vpow.pop %v1718
    %v1720 = vsel %vm1098, %v1717, 0.0
    %1721 = vadd.xlane.f32.xlu0 %v1720
    %v1722 = vpop.xlane.xlu0 %1721
    %v1723 = vsel %vm1098, %v1719, 0.0
    %1724 = vadd.xlane.f32.xlu0 %v1723
    %v1725 = vpop.xlane.xlu0 %1724
    %v1726 = vrcp.pop %v1722
    %v1727 = vmul.f32 %v1722, %v1726
    %v1728 = vsub.f32 1.0, %v1727
    %v1729 = vmul.f32 %v1726, %v1728
    %v1730 = vadd.f32 %v1726, %v1729
    %vm1731 = vweird.f32 %v1722
    %vm1732 = vweird.f32 %v1726
    %vm1733 = vmor %vm1731, %vm1732
    %v1734 = vsel %vm1733, %v1726, %v1730
    %v1735 = vand.u32 2147483647, %v1722
    %vm1736 = vcmp.eq.f32.partialorder %v1735, 8.507059e+37
    %v1737 = vand.u32 %v1722, 2147483648
    %v1738 = vor.u32 1.1754944e-38, %v1737
    %v1739 = vsel %vm1736, %v1738, %v1734
    %v1740 = vmul.f32 %v1717, %v1739
    %v1741 = vrcp.pop %v1725
    %v1742 = vmul.f32 %v1725, %v1741
    %v1743 = vsub.f32 1.0, %v1742
    %v1744 = vmul.f32 %v1741, %v1743
    %v1745 = vadd.f32 %v1741, %v1744
    %vm1746 = vweird.f32 %v1725
    %vm1747 = vweird.f32 %v1741
    %vm1748 = vmor %vm1746, %vm1747
    %v1749 = vsel %vm1748, %v1741, %v1745
    %v1750 = vand.u32 2147483647, %v1725
    %vm1751 = vcmp.eq.f32.partialorder %v1750, 8.507059e+37
    %v1752 = vand.u32 %v1725, 2147483648
    %v1753 = vor.u32 1.1754944e-38, %v1752
    %v1754 = vsel %vm1751, %v1753, %v1749
    %v1755 = vmul.f32 %v1719, %v1754
    %v1756 = vadd.f32 %v1551, %v1740
    %v1757 = vadd.f32 %v1552, %v1755
    %1758 = vrot.lane.b32.xlu0 %v1022, 72
    %v1759 = vpop.permute.xlu0 %1758
    %1760 = vrot.lane.b32.xlu0 %v1025, 72
    %v1761 = vpop.permute.xlu0 %1760
    %v1765 = vsel %vm1098, %v1740, 0
    %1767 = vmatpush.msra.mxu0 0.0
    %1768 = vmatpush.msra.mxu0 0.0
    %1769 = vmatpush.msra.mxu0 0.0
    %1770 = vmatpush.msra.mxu0 0.0
    %1771 = vmatpush.msra.mxu0 0.0
    %1772 = vmatpush.msra.mxu0 0.0
    %1773 = vmatpush.msra.mxu0 0.0
    %1774 = vmatpush.msra.mxu0 0.0
    %1775 = vmatpush.msra.mxu0 0.0
    %1776 = vmatpush.msra.mxu0 0.0
    %1777 = vmatpush.msra.mxu0 0.0
    %1778 = vmatpush.msra.mxu0 0.0
    %1779 = vmatpush.msra.mxu0 0.0
    %1780 = vmatpush.msra.mxu0 0.0
    %1781 = vmatpush.msra.mxu0 %v1761
    %1782 = vmatpush.msra.mxu0 %v1759
    %1783 = vmatmul.f32.gmra.mxu0 %v1765
    %v1784 = vpop.f32.mrf.mxu0
    %v1785 = vadd.f32 0.0, %v1784
    %1786 = vdwg.mxu0
    %1787 = vrot.lane.b32.xlu0 %v1028, 72
    %v1788 = vpop.permute.xlu0 %1787
    %1789 = vrot.lane.b32.xlu0 %v1031, 72
    %v1790 = vpop.permute.xlu0 %1789
    %v1794 = vsel %vm1098, %v1755, 0
    %1796 = vmatpush.msra.mxu0 0.0
    %1797 = vmatpush.msra.mxu0 0.0
    %1798 = vmatpush.msra.mxu0 0.0
    %1799 = vmatpush.msra.mxu0 0.0
    %1800 = vmatpush.msra.mxu0 0.0
    %1801 = vmatpush.msra.mxu0 0.0
    %1802 = vmatpush.msra.mxu0 0.0
    %1803 = vmatpush.msra.mxu0 0.0
    %1804 = vmatpush.msra.mxu0 0.0
    %1805 = vmatpush.msra.mxu0 0.0
    %1806 = vmatpush.msra.mxu0 0.0
    %1807 = vmatpush.msra.mxu0 0.0
    %1808 = vmatpush.msra.mxu0 0.0
    %1809 = vmatpush.msra.mxu0 0.0
    %1810 = vmatpush.msra.mxu0 %v1790
    %1811 = vmatpush.msra.mxu0 %v1788
    %1812 = vmatmul.f32.gmra.mxu0 %v1794
    %v1813 = vpop.f32.mrf.mxu0
    %v1814 = vadd.f32 0.0, %v1813
    %1815 = vdwg.mxu0
    %v1817 = vsel %vm89, %v1785, 0
    %v1820 = vsel %vm89, %v1814, 0
    %1822 = vmatpush.msra.mxu0 0.0
    %1823 = vmatpush.msra.mxu0 0.0
    %1824 = vmatpush.msra.mxu0 0.0
    %1825 = vmatpush.msra.mxu0 0.0
    %1826 = vmatpush.msra.mxu0 0.0
    %1827 = vmatpush.msra.mxu0 0.0
    %1828 = vmatpush.msra.mxu0 0.0
    %1829 = vmatpush.msra.mxu0 0.0
    %1830 = vmatpush.msra.mxu0 0.0
    %1831 = vmatpush.msra.mxu0 0.0
    %1832 = vmatpush.msra.mxu0 0.0
    %1833 = vmatpush.msra.mxu0 0.0
    %1834 = vmatpush.msra.mxu0 0.0
    %1835 = vmatpush.msra.mxu0 0.0
    %1836 = vmatpush.msra.mxu0 0.0
    %1837 = vmatpush.msra.mxu0 %v1036
    %1838 = vmatmul.f32.gmra.mxu0 %v1817
    %v1839 = vpop.f32.mrf.mxu0
    %v1840 = vadd.f32 0.0, %v1839
    %1841 = vmatmul.f32.gmra.mxu0 %v1820
    %v1842 = vpop.f32.mrf.mxu0
    %v1843 = vadd.f32 0.0, %v1842
    %1844 = vdwg.mxu0
    %v1845 = vadd.f32 %v1640, %v1840
    %v1846 = vadd.f32 %v1641, %v1843
    %v1847 = vperm.slane %v1037, 0
    %v1848 = vadd.f32 %v1845, %v1847
    %v1849 = vadd.f32 %v1846, %v1847
    %v1850 = vmul.f32 %v1756, 0.25
    %v1851 = vmul.f32 %v1757, 0.25
    %v1852 = vadd.f32 %v908, %v1848
    %v1853 = vadd.f32 %v909, %v1849
    %v1854 = vld [vmem:[%s2 + $0x8] sm:$0x1]
    %v1855 = vld [vmem:[%s2 + $0xb] sm:$0x1]
    %v1856 = vsel %vm852, %v1852, 0.0
    %1857 = vadd.xlane.f32.xlu0 %v1856
    %v1858 = vpop.xlane.xlu0 %1857
    %v1859 = vsel %vm852, %v1853, 0.0
    %1860 = vadd.xlane.f32.xlu0 %v1859
    %v1861 = vpop.xlane.xlu0 %1860
    %v1862 = vmul.f32 %v1858, %v865
    %v1863 = vmul.f32 %v1861, %v865
    %v1864 = vsub.f32 %v1852, %v1862
    %v1865 = vsub.f32 %v1853, %v1863
    %v1866 = vmul.f32 %v1864, %v1864
    %v1867 = vmul.f32 %v1865, %v1865
    %v1868 = vsel %vm852, %v1866, 0.0
    %1869 = vadd.xlane.f32.xlu0 %v1868
    %v1870 = vpop.xlane.xlu0 %1869
    %v1871 = vsel %vm852, %v1867, 0.0
    %1872 = vadd.xlane.f32.xlu0 %v1871
    %v1873 = vpop.xlane.xlu0 %1872
    %v1874 = vmul.f32 %v1870, %v865
    %v1875 = vmul.f32 %v1873, %v865
    %v1876 = vadd.f32 %v1874, 1e-05
    %v1877 = vadd.f32 %v1875, 1e-05
    %v1878 = vrsqrt.pop %v1876
    %v1879 = vmul.f32 %v1878, %v1876
    %v1880 = vmul.f32 %v1879, %v1878
    %v1881 = vmul.f32 0.5, %v1880
    %v1882 = vsub.f32 1.5, %v1881
    %v1883 = vmul.f32 %v1878, %v1882
    %vm1884 = vweird.f32 %v1876
    %vm1885 = vweird.f32 %v1878
    %vm1886 = vmor %vm1884, %vm1885
    %v1887 = vsel %vm1886, %v1878, %v1883
    %v1888 = vrsqrt.pop %v1877
    %v1889 = vmul.f32 %v1888, %v1877
    %v1890 = vmul.f32 %v1889, %v1888
    %v1891 = vmul.f32 0.5, %v1890
    %v1892 = vsub.f32 1.5, %v1891
    %v1893 = vmul.f32 %v1888, %v1892
    %vm1894 = vweird.f32 %v1877
    %vm1895 = vweird.f32 %v1888
    %vm1896 = vmor %vm1894, %vm1895
    %v1897 = vsel %vm1896, %v1888, %v1893
    %v1898 = vmul.f32 %v1864, %v1887
    %v1899 = vmul.f32 %v1865, %v1897
    %v1900 = vperm.slane %v1854, 0
    %v1901 = vmul.f32 %v1898, %v1900
    %v1902 = vmul.f32 %v1899, %v1900
    %v1903 = vperm.slane %v1855, 0
    %v1904 = vadd.f32 %v1901, %v1903
    %v1905 = vadd.f32 %v1902, %v1903
    %v1906 = vld [vmem:[#allocation2 + $0x100] sm:$0xff]
    %v1907 = vld [vmem:[#allocation2 + $0x108] sm:$0xff]
    %v1908 = vld [vmem:[#allocation2 + $0x110] sm:$0xff]
    %v1909 = vld [vmem:[#allocation2 + $0x118] sm:$0xff]
    %v1910 = vld [vmem:[%s2 + $0x5] sm:$0x1]
    %v1911 = vperm.slane %v1910, 0
    %v1913 = vsel %vm852, %v1904, 0
    %v1916 = vsel %vm852, %v1905, 0
    %1918 = vmatpush.msra.mxu0 0.0
    %1919 = vmatpush.msra.mxu0 0.0
    %1920 = vmatpush.msra.mxu0 0.0
    %1921 = vmatpush.msra.mxu0 0.0
    %1922 = vmatpush.msra.mxu0 0.0
    %1923 = vmatpush.msra.mxu0 0.0
    %1924 = vmatpush.msra.mxu0 0.0
    %1925 = vmatpush.msra.mxu0 0.0
    %1926 = vmatpush.msra.mxu0 0.0
    %1927 = vmatpush.msra.mxu0 0.0
    %1928 = vmatpush.msra.mxu0 0.0
    %1929 = vmatpush.msra.mxu0 0.0
    %1930 = vmatpush.msra.mxu0 %v1909
    %1931 = vmatpush.msra.mxu0 %v1908
    %1932 = vmatpush.msra.mxu0 %v1907
    %1933 = vmatpush.msra.mxu0 %v1906
    %1934 = vmatmul.f32.gmra.mxu0 %v1913
    %v1935 = vpop.f32.mrf.mxu0
    %v1936 = vadd.f32 %v1911, %v1935
    %1937 = vmatmul.f32.gmra.mxu0 %v1916
    %v1938 = vpop.f32.mrf.mxu0
    %v1939 = vadd.f32 %v1911, %v1938
    %1940 = vdwg.mxu0
    %v1941 = vmax.f32 %v1936, 0.0
    %v1942 = vmax.f32 %v1939, 0.0
    %v1943 = vld [vmem:[#allocation2 + $0x120] sm:$0xff]
    %v1944 = vld [vmem:[#allocation2 + $0x128] sm:$0xff]
    %v1945 = vld [vmem:[#allocation2 + $0x130] sm:$0xff]
    %v1946 = vld [vmem:[#allocation2 + $0x138] sm:$0xff]
    %v1947 = vld [vmem:[#allocation2 + $0x140] sm:$0xff]
    %v1948 = vld [vmem:[#allocation2 + $0x148] sm:$0xff]
    %v1949 = vld [vmem:[#allocation2 + $0x150] sm:$0xff]
    %v1950 = vld [vmem:[#allocation2 + $0x158] sm:$0xff]
    %v1951 = vld [vmem:[%s2 + $0x6] sm:$0x1]
    %v1952 = vperm.slane %v1951, 0
    %v1954 = vsel %vm51, %v1941, 0
    %v1957 = vsel %vm51, %v1942, 0
    %1959 = vmatpush.msra.mxu0 0.0
    %1960 = vmatpush.msra.mxu0 0.0
    %1961 = vmatpush.msra.mxu0 0.0
    %1962 = vmatpush.msra.mxu0 0.0
    %1963 = vmatpush.msra.mxu0 0.0
    %1964 = vmatpush.msra.mxu0 0.0
    %1965 = vmatpush.msra.mxu0 0.0
    %1966 = vmatpush.msra.mxu0 0.0
    %1967 = vmatpush.msra.mxu0 %v1950
    %1968 = vmatpush.msra.mxu0 %v1949
    %1969 = vmatpush.msra.mxu0 %v1948
    %1970 = vmatpush.msra.mxu0 %v1947
    %1971 = vmatpush.msra.mxu0 %v1946
    %1972 = vmatpush.msra.mxu0 %v1945
    %1973 = vmatpush.msra.mxu0 %v1944
    %1974 = vmatpush.msra.mxu0 %v1943
    %1975 = vmatmul.f32.gmra.mxu0 %v1954
    %v1976 = vpop.f32.mrf.mxu0
    %v1977 = vadd.f32 %v1952, %v1976
    %1978 = vmatmul.f32.gmra.mxu0 %v1957
    %v1979 = vpop.f32.mrf.mxu0
    %v1980 = vadd.f32 %v1952, %v1979
    %1981 = vdwg.mxu0
    %v1982 = vadd.f32 %v1904, %v1977
    %v1983 = vadd.f32 %v1905, %v1980
    %v1984 = vld [vmem:[%s2 + $0x9] sm:$0x1]
    %v1985 = vld [vmem:[%s2 + $0xc] sm:$0x1]
    %v1986 = vsel %vm852, %v1982, 0.0
    %1987 = vadd.xlane.f32.xlu0 %v1986
    %v1988 = vpop.xlane.xlu0 %1987
    %v1989 = vsel %vm852, %v1983, 0.0
    %1990 = vadd.xlane.f32.xlu0 %v1989
    %v1991 = vpop.xlane.xlu0 %1990
    %v1992 = vmul.f32 %v1988, %v865
    %v1993 = vmul.f32 %v1991, %v865
    %v1994 = vsub.f32 %v1982, %v1992
    %v1995 = vsub.f32 %v1983, %v1993
    %v1996 = vmul.f32 %v1994, %v1994
    %v1997 = vmul.f32 %v1995, %v1995
    %v1998 = vsel %vm852, %v1996, 0.0
    %1999 = vadd.xlane.f32.xlu0 %v1998
    %v2000 = vpop.xlane.xlu0 %1999
    %v2001 = vsel %vm852, %v1997, 0.0
    %2002 = vadd.xlane.f32.xlu0 %v2001
    %v2003 = vpop.xlane.xlu0 %2002
    %v2004 = vmul.f32 %v2000, %v865
    %v2005 = vmul.f32 %v2003, %v865
    %v2006 = vadd.f32 %v2004, 1e-05
    %v2007 = vadd.f32 %v2005, 1e-05
    %v2008 = vrsqrt.pop %v2006
    %v2009 = vmul.f32 %v2008, %v2006
    %v2010 = vmul.f32 %v2009, %v2008
    %v2011 = vmul.f32 0.5, %v2010
    %v2012 = vsub.f32 1.5, %v2011
    %v2013 = vmul.f32 %v2008, %v2012
    %vm2014 = vweird.f32 %v2006
    %vm2015 = vweird.f32 %v2008
    %vm2016 = vmor %vm2014, %vm2015
    %v2017 = vsel %vm2016, %v2008, %v2013
    %v2018 = vrsqrt.pop %v2007
    %v2019 = vmul.f32 %v2018, %v2007
    %v2020 = vmul.f32 %v2019, %v2018
    %v2021 = vmul.f32 0.5, %v2020
    %v2022 = vsub.f32 1.5, %v2021
    %v2023 = vmul.f32 %v2018, %v2022
    %vm2024 = vweird.f32 %v2007
    %vm2025 = vweird.f32 %v2018
    %vm2026 = vmor %vm2024, %vm2025
    %v2027 = vsel %vm2026, %v2018, %v2023
    %v2028 = vmul.f32 %v1994, %v2017
    %v2029 = vmul.f32 %v1995, %v2027
    %v2030 = vperm.slane %v1984, 0
    %v2031 = vmul.f32 %v2028, %v2030
    %v2032 = vmul.f32 %v2029, %v2030
    %v2033 = vperm.slane %v1985, 0
    %v2034 = vadd.f32 %v2031, %v2033
    %v2035 = vadd.f32 %v2032, %v2033
    %2036 = vst.msk [vmem:[#allocation5] sm:$0xff] %vm852, %v2034
    %2037 = vst.msk [vmem:[#allocation5 + $0x8] sm:$0xff] %vm852, %v2035
    %2038 = vst.msk [vmem:[#allocation6] sm:$0xff] %vm1098, %v1850
    %2039 = vst.msk [vmem:[#allocation6 + $0x8] sm:$0xff] %vm1098, %v1851
    %2040 = vst.msk [vmem:[#allocation8] sm:$0xff] %vm89, %v846
    %2041 = vst.msk [vmem:[#allocation8 + $0x8] sm:$0xff] %vm89, %v847
    // Predicated region
    $region18: #{content_decoder_layer.1} parent=1 // pred_check
      _
    $region19: #{content_decoder_layer.1} parent=1 // pred_check_branch
      %2043 = sbr.rel (0) target = $region21
    $region20: #{content_decoder_layer.1} parent=1 // pred_region
      %2045 = vsyncadd [#allocation4], 0
      %s2046 = sshll.u32 [#allocation5], 4
      %s2047 = int_to_ptr.vmem [resolvable:$true] %s2046
      %s2048 = sshll.u32 %s3, 4
      %s2049 = int_to_ptr.hbm [resolvable:$true] %s2048
      %2054 = dma.vmem_to_hbm [thread:$0]  %s2047, 256, %s2049, [#allocation4], 128, 128, 8
    $region21: #{content_decoder_layer.1} parent=1 // pred_fallthru
      _
    // Predicated region
    $region22: #{content_decoder_layer.1} parent=1 // pred_check
      _
    $region23: #{content_decoder_layer.1} parent=1 // pred_check_branch
      %2056 = sbr.rel (0) target = $region25
    $region24: #{content_decoder_layer.1} parent=1 // pred_region
      %2058 = vsyncadd [#allocation7], 0
      %s2059 = sshll.u32 [#allocation6], 4
      %s2060 = int_to_ptr.vmem [resolvable:$true] %s2059
      %s2061 = sshll.u32 %s4, 4
      %s2062 = int_to_ptr.hbm [resolvable:$true] %s2061
      %2067 = dma.vmem_to_hbm [thread:$0]  %s2060, 256, %s2062, [#allocation7], 128, 128, 8
    $region25: #{content_decoder_layer.1} parent=1 // pred_fallthru
      _
    // Predicated region
    $region26: #{content_decoder_layer.1} parent=1 // pred_check
      _
    $region27: #{content_decoder_layer.1} parent=1 // pred_check_branch
      %2069 = sbr.rel (0) target = $region29
    $region28: #{content_decoder_layer.1} parent=1 // pred_region
      %2071 = vsyncadd [#allocation7], 0
      %s2072 = sshll.u32 [#allocation8], 4
      %s2073 = int_to_ptr.vmem [resolvable:$true] %s2072
      %s2074 = sshll.u32 %s5, 4
      %s2075 = int_to_ptr.hbm [resolvable:$true] %s2074
      %2080 = dma.vmem_to_hbm [thread:$0]  %s2073, 256, %s2075, [#allocation7], 128, 128, 8
    $region29: #{content_decoder_layer.1} parent=1 // pred_fallthru
      _
    // Predicated region
    $region30: #{content_decoder_layer.1} parent=1 // pred_check
      _
    $region31: #{content_decoder_layer.1} parent=1 // pred_check_branch
      %2082 = sbr.rel (0) target = $region33
    $region32: #{content_decoder_layer.1} parent=1 // pred_region
      %2084 = dma.done [#allocation4], 256
    $region33: #{content_decoder_layer.1} parent=1 // pred_fallthru
      _
    // Predicated region
    $region34: #{content_decoder_layer.1} parent=1 // pred_check
      _
    $region35: #{content_decoder_layer.1} parent=1 // pred_check_branch
      %2086 = sbr.rel (0) target = $region37
    $region36: #{content_decoder_layer.1} parent=1 // pred_region
      %2088 = dma.done [#allocation7], 256
    $region37: #{content_decoder_layer.1} parent=1 // pred_fallthru
      _
    // Predicated region
    $region38: #{content_decoder_layer.1} parent=1 // pred_check
      _
    $region39: #{content_decoder_layer.1} parent=1 // pred_check_branch
      %2090 = sbr.rel (0) target = $region41
    $region40: #{content_decoder_layer.1} parent=1 // pred_region
      %2092 = dma.done [#allocation7], 256
    $region41: #{content_decoder_layer.1} parent=1 // pred_fallthru
      _
    %2093 = vsyncpa [#allocation3], 1
    %2094 = vsyncpa [#allocation4], 1
    %2095 = vsyncpa [#allocation7], 1

</llo_original>
